<compile_context>
chip_gen: v7x
topology: tpu7x:2x2x1
jax: 0.10.0
libtpu: 0.0.40
codegen_flags: <defaults>
</compile_context>

<pallas_src>
import jax
import jax.numpy as jnp
from jax.experimental import pallas as pl
from jax.experimental.pallas import tpu as pltpu

# ----------------------------- config ("args") ------------------------------
B = 2            # batch
T = 8            # args.ws (sequence length)
X_DIM = 16       # args.x_dim
H_DIM = 32       # args.h_dim
NUM_LAYERS = 1   # args.num_layers
POOL = "mean"    # args.pool
EMBED_DIM = 8    # args.embed_dim
SPARSE_NUMS = [10, 5, 7, 6]          # [user_vocab, f1, f2, f3]
N_FIELDS = len(SPARSE_NUMS) - 1      # 3
UE_DIM = N_FIELDS * EMBED_DIM        # 24 (user-embed width == flattened feat width)
DENSE_DIM = 12   # args.dense_dim
OUT_DIM = 6      # args.out_dim
FUS_DIM = OUT_DIM * 4                # 24
IN_DIM = 3 * H_DIM                   # pooled + userW + featW = 96

# feat_shift = cat([0], cumsum(sparse_nums[1:-1])) — Python constants, folded at trace time
FEAT_SHIFT = [0]
for _v in SPARSE_NUMS[1:-1]:
    FEAT_SHIFT.append(FEAT_SHIFT[-1] + _v)          # [0, 5, 12]

# ----------------- packed-slab layouts (static Python constants) -------------
# GRU slab (X+H+2, 3H): rows = [Wih | Whh | b_x (b_ih with b_hr/b_hz folded) | b_hh]
GRU_WIH_R0, GRU_WIH_R1 = 0, X_DIM
GRU_WHH_R0, GRU_WHH_R1 = X_DIM, X_DIM + H_DIM
GRU_BX_R = X_DIM + H_DIM
GRU_BHH_R = X_DIM + H_DIM + 1
GRU_ROWS = X_DIM + H_DIM + 2                         # 50

# head slab (IN_DIM+1, H+FUS+OUT) = (97, 62):
#   cols [0:H)       : rows [0:48) uw, [48:60) fw, row 60 userW bias, row 61 featW bias
#   cols [H:H+FUS)   : rows [0:96) fusion W, row 96 fusion bias
#   cols [H+FUS:62)  : rows [0:24) out W,    row 24 out bias
UW_R0, UW_R1 = 0, 2 * UE_DIM                          # 0, 48
FW_R0, FW_R1 = UW_R1, UW_R1 + DENSE_DIM               # 48, 60
UB_R = FW_R1                                          # 60
FB_R = FW_R1 + 1                                      # 61
FUS_C0, FUS_C1 = H_DIM, H_DIM + FUS_DIM               # 32, 56
OUT_C0, OUT_C1 = FUS_C1, FUS_C1 + OUT_DIM             # 56, 62
HEAD_ROWS = IN_DIM + 1                                # 97
HEAD_COLS = OUT_C1                                    # 62

# embed slab (user_vocab + sum(feat_vocabs), UE_DIM):
#   rows [0:user_vocab) : 24-wide user_embed rows
#   rows [user_vocab:)  : feat_embed rows in cols [0:EMBED_DIM) (rest zero)
FEAT_ROW0 = SPARSE_NUMS[0]                            # 10
EMB_ROWS = SPARSE_NUMS[0] + sum(SPARSE_NUMS[1:])      # 28


# ------------------------------ fused kernel ---------------------------------
def fused_kernel(sp_ref,      # (B, 4) int32, SMEM — sparse ids
                 x_ref,       # (T*B, X) f32, time-major: row t*B + b == x[b, t]
                 dense_ref,   # (B, DENSE_DIM)
                 gru_ref,     # (50, 96) GRU slab
                 emb_ref,     # (28, 24) embedding slab
                 head_ref,    # (97, 62) head slab
                 o_ref,       # (B, OUT_DIM)
                 uf_scr):     # (B, 48) VMEM scratch for [user_embed | field embeds]
    f32 = jnp.float32
    B_ = o_ref.shape[0]
    T_ = x_ref.shape[0] // B_
    H_ = H_DIM

    # ---- GRU: input projection hoisted over all T steps (one MXU push) ----
    wih = gru_ref[GRU_WIH_R0:GRU_WIH_R1, :]                          # (X, 3H)
    whh = gru_ref[GRU_WHH_R0:GRU_WHH_R1, :]                          # (H, 3H)
    b_x = gru_ref[GRU_BX_R:GRU_BX_R + 1, :]                          # b_ih (+b_hr,b_hz folded)
    gates_x = jnp.dot(x_ref[...], wih, preferred_element_type=f32) + b_x   # (T*B, 3H)
    b_hn = jnp.broadcast_to(gru_ref[GRU_BHH_R:GRU_BHH_R + 1, 2 * H_:], (B_, H_))

    h = jnp.zeros((B_, H_), f32)
    acc = jnp.zeros((B_, H_), f32)
    # T small & static -> fully unrolled; per step only one (B,H)@(H,3H) matmul +
    # EUP sigmoid/tanh sit on the serial path.  (If a bundle dump shows the MXU
    # result-FIFO drain binding on v5e/v6e, this matmul could move to the VPU.)
    for t in range(T_):
        gx = gates_x[t * B_:(t + 1) * B_, :]                         # contiguous static slice
        gh = jnp.dot(h, whh, preferred_element_type=f32)             # (B, 3H), no bias
        r = jax.nn.sigmoid(gx[:, 0:H_] + gh[:, 0:H_])
        z = jax.nn.sigmoid(gx[:, H_:2 * H_] + gh[:, H_:2 * H_])
        n = jnp.tanh(gx[:, 2 * H_:] + r * (gh[:, 2 * H_:] + b_hn))   # b_hn inside r*(.)
        h = n + z * (h - n)                                          # == (1-z)*n + z*h
        acc = acc + h
    pooled = acc * (1.0 / T_)                                        # pool == 'mean'

    # ---- sparse-feature gathers: rows stored straight into (B,48) scratch ----
    # TODO(synk): for production-size vocabularies keep the embed tables in HBM
    # (memory_space=pl.ANY) and DMA only the needed rows (esp. v7x, 64 MiB VMEM);
    # full-table VMEM residency is only right at these toy sizes.
    for b in range(B_):
        uf_scr[b:b + 1, 0:UE_DIM] = emb_ref[pl.ds(sp_ref[b, 0], 1), :]          # (1,24)
        for j in range(N_FIELDS):
            idx = sp_ref[b, j + 1] + (FEAT_ROW0 + FEAT_SHIFT[j])
            c0 = UE_DIM + j * EMBED_DIM
            uf_scr[b:b + 1, c0:c0 + EMBED_DIM] = emb_ref[pl.ds(idx, 1), 0:EMBED_DIM]

    # ---- userW + exact L2-normalize (F.normalize p=2, dim=1, eps=1e-12) ----
    u = (jnp.dot(uf_scr[...], head_ref[UW_R0:UW_R1, 0:H_], preferred_element_type=f32)
         + head_ref[UB_R:UB_R + 1, 0:H_])                            # (B, H)
    ssq = jnp.sum(u * u, axis=1, keepdims=True)
    u = u / jnp.sqrt(jnp.maximum(ssq, 1e-24))                        # == u / max(||u||, 1e-12)

    # ---- featW on dense ----
    d = (jnp.dot(dense_ref[...], head_ref[FW_R0:FW_R1, 0:H_], preferred_element_type=f32)
         + head_ref[FB_R:FB_R + 1, 0:H_])                            # (B, H)

    # ---- fusion + ReLU as split-contraction over [pooled | u | d] (no lane concat) ----
    fus = (jnp.dot(pooled, head_ref[0:H_, FUS_C0:FUS_C1], preferred_element_type=f32)
           + jnp.dot(u, head_ref[H_:2 * H_, FUS_C0:FUS_C1], preferred_element_type=f32)
           + jnp.dot(d, head_ref[2 * H_:3 * H_, FUS_C0:FUS_C1], preferred_element_type=f32)
           + head_ref[IN_DIM:IN_DIM + 1, FUS_C0:FUS_C1])
    fus = jnp.maximum(fus, 0.0)                                      # (B, FUS_DIM)

    # ---- out layer ----
    o_ref[...] = (jnp.dot(fus, head_ref[0:FUS_DIM, OUT_C0:OUT_C1],
                          preferred_element_type=f32)
                  + head_ref[FUS_DIM:FUS_DIM + 1, OUT_C0:OUT_C1])


# ------------------------------- wrapper --------------------------------------
@jax.jit
def multi_label_model_forward(x, u_sparse, dense, packed):
    Bsz, T_, X_ = x.shape
    # time-major: row t*B + b == x[b, t, :]. ~2 KB wrapper transpose; strips the
    # per-step strided row gather + sublane concat off the GRU critical path.
    x2 = jnp.transpose(x, (1, 0, 2)).reshape(T_ * Bsz, X_)

    vmem = pl.BlockSpec(memory_space=pltpu.MemorySpace.VMEM)
    smem = pl.BlockSpec(memory_space=pltpu.MemorySpace.SMEM)

    # TODO(synk): if batch grows well beyond 2, add a leading "parallel" batch grid
    # axis (dimension_semantics) so v7x's two TensorCores split it; pointless at B=2.
    return pl.pallas_call(
        fused_kernel,
        out_shape=jax.ShapeDtypeStruct((Bsz, OUT_DIM), jnp.float32),
        in_specs=[smem, vmem, vmem, vmem, vmem, vmem],
        out_specs=vmem,
        scratch_shapes=[pltpu.VMEM((Bsz, 2 * UE_DIM), jnp.float32)],
        cost_estimate=pl.CostEstimate(flops=170_000, transcendentals=1_600,
                                      bytes_accessed=48_000),
    )(u_sparse, x2, dense,
      packed["gru_slab"], packed["embed_slab"], packed["head_slab"])


# --------------------------- deterministic params -----------------------------
def make_params(key):
    ks = jax.random.split(key, 12)
    p = {}
    # GRU weights, concatenated gate order [r | z | n] (PyTorch layout, transposed)
    p["gru_wih"] = 0.1 * jax.random.normal(ks[0], (X_DIM, 3 * H_DIM), jnp.float32)
    p["gru_whh"] = 0.1 * jax.random.normal(ks[1], (H_DIM, 3 * H_DIM), jnp.float32)
    p["gru_b_ih"] = 0.1 * jax.random.normal(ks[2], (3 * H_DIM,), jnp.float32)
    p["gru_b_hh"] = 0.1 * jax.random.normal(ks[3], (3 * H_DIM,), jnp.float32)
    # Embedding tables (xavier-ish)
    p["user_embed"] = 0.05 * jax.random.normal(ks[4], (SPARSE_NUMS[0], UE_DIM), jnp.float32)
    p["feat_embed"] = 0.05 * jax.random.normal(ks[5], (sum(SPARSE_NUMS[1:]), EMBED_DIM),
                                               jnp.float32)
    # userW: Linear(2*UE_DIM -> H) ; featW: Linear(DENSE_DIM -> H)
    p["uw"] = 0.005 * jax.random.normal(ks[6], (2 * UE_DIM, H_DIM), jnp.float32)
    p["uw_b"] = 0.01 * jax.random.normal(ks[7], (H_DIM,), jnp.float32)
    p["fw"] = 0.005 * jax.random.normal(ks[8], (DENSE_DIM, H_DIM), jnp.float32)
    p["fw_b"] = 0.01 * jax.random.normal(ks[9], (H_DIM,), jnp.float32)
    # fusion_layer: Linear(3H -> FUS_DIM) over cat([pooled, u, d]); out_layer: FUS_DIM -> OUT_DIM
    p["fus_w"] = 0.005 * jax.random.normal(ks[10], (IN_DIM, FUS_DIM), jnp.float32)
    p["fus_b"] = jnp.zeros((FUS_DIM,), jnp.float32)
    p["out_w"] = 0.005 * jax.random.normal(ks[11], (FUS_DIM, OUT_DIM), jnp.float32)
    p["out_b"] = jnp.zeros((OUT_DIM,), jnp.float32)
    return p


def pack_params(p):
    """One-time packing of the 14 small tensors into 3 f32 slabs (fewer per-call DMAs)."""
    # GRU slab: fold the recurrent r/z biases into the input-side bias row.
    b_x = p["gru_b_ih"].at[:2 * H_DIM].add(p["gru_b_hh"][:2 * H_DIM])
    gru_slab = jnp.concatenate(
        [p["gru_wih"], p["gru_whh"], b_x[None, :], p["gru_b_hh"][None, :]], axis=0)
    assert gru_slab.shape == (GRU_ROWS, 3 * H_DIM)

    head = jnp.zeros((HEAD_ROWS, HEAD_COLS), jnp.float32)
    head = head.at[UW_R0:UW_R1, 0:H_DIM].set(p["uw"])
    head = head.at[FW_R0:FW_R1, 0:H_DIM].set(p["fw"])
    head = head.at[UB_R, 0:H_DIM].set(p["uw_b"])
    head = head.at[FB_R, 0:H_DIM].set(p["fw_b"])
    head = head.at[0:IN_DIM, FUS_C0:FUS_C1].set(p["fus_w"])
    head = head.at[IN_DIM, FUS_C0:FUS_C1].set(p["fus_b"])
    head = head.at[0:FUS_DIM, OUT_C0:OUT_C1].set(p["out_w"])
    head = head.at[FUS_DIM, OUT_C0:OUT_C1].set(p["out_b"])

    emb = jnp.zeros((EMB_ROWS, UE_DIM), jnp.float32)
    emb = emb.at[0:FEAT_ROW0, :].set(p["user_embed"])
    emb = emb.at[FEAT_ROW0:, 0:EMBED_DIM].set(p["feat_embed"])

    return {"gru_slab": gru_slab, "head_slab": head, "embed_slab": emb}


# --------------------------- pure-JAX reference --------------------------------
def reference_forward(x, u_sparse, dense, p):
    Bsz = x.shape[0]
    h = jnp.zeros((Bsz, H_DIM), jnp.float32)
    hs = []
    for t in range(T):
        gx = x[:, t, :] @ p["gru_wih"] + p["gru_b_ih"]
        gh = h @ p["gru_whh"] + p["gru_b_hh"]
        r = jax.nn.sigmoid(gx[:, :H_DIM] + gh[:, :H_DIM])
        z = jax.nn.sigmoid(gx[:, H_DIM:2 * H_DIM] + gh[:, H_DIM:2 * H_DIM])
        n = jnp.tanh(gx[:, 2 * H_DIM:] + r * gh[:, 2 * H_DIM:])
        h = (1.0 - z) * n + z * h
        hs.append(h)
    pooled = jnp.mean(jnp.stack(hs, axis=1), axis=1)

    u_emb = p["user_embed"][u_sparse[:, 0]]
    f_idx = u_sparse[:, 1:] + jnp.array(FEAT_SHIFT, jnp.int32)[None, :]
    f_emb = p["feat_embed"][f_idx].reshape(Bsz, -1)
    u = jnp.concatenate([u_emb, f_emb], axis=-1) @ p["uw"] + p["uw_b"]
    u = u / jnp.maximum(jnp.sqrt(jnp.sum(u * u, axis=1, keepdims=True)), 1e-12)
    d = dense @ p["fw"] + p["fw_b"]
    fin = jnp.concatenate([pooled, u, d], axis=-1)
    fus = jax.nn.relu(fin @ p["fus_w"] + p["fus_b"])
    return fus @ p["out_w"] + p["out_b"]


# ---------------------------------- main --------------------------------------
if __name__ == "__main__":
    key = jax.random.PRNGKey(0)
    k_x, k_u, k_f1, k_f2, k_f3, k_d, k_p = jax.random.split(key, 7)

    params = make_params(k_p)
    packed = pack_params(params)

    x = jax.random.normal(k_x, (B, T, X_DIM), jnp.float32)                 # (B, T, X)
    u_sparse = jnp.stack(
        [jax.random.randint(k_u, (B,), 0, SPARSE_NUMS[0]),
         jax.random.randint(k_f1, (B,), 0, SPARSE_NUMS[1]),
         jax.random.randint(k_f2, (B,), 0, SPARSE_NUMS[2]),
         jax.random.randint(k_f3, (B,), 0, SPARSE_NUMS[3])],
        axis=1).astype(jnp.int32)                                          # (B, 4)
    dense = jax.random.normal(k_d, (B, DENSE_DIM), jnp.float32)            # (B, DENSE_DIM)

    out = multi_label_model_forward(x, u_sparse, dense, packed)
    out = jax.block_until_ready(out)
    assert out.shape == (B, OUT_DIM), out.shape
    assert bool(jnp.all(jnp.isfinite(out)))

    ref = reference_forward(x, u_sparse, dense, params)
    assert bool(jnp.allclose(out, ref, rtol=5e-2, atol=1e-5)), (out, ref)

    print("KERNEL_OK")
</pallas_src>

<mosaic_0001>
module attributes {stable_mosaic.version = 11 : i64} {
  func.func @fused_kernel(%arg0: memref<2x4xi32, #tpu.memory_space<smem>>, %arg1: memref<16x16xf32, #tpu.memory_space<vmem>>, %arg2: memref<2x12xf32, #tpu.memory_space<vmem>>, %arg3: memref<50x96xf32, #tpu.memory_space<vmem>>, %arg4: memref<28x24xf32, #tpu.memory_space<vmem>>, %arg5: memref<97x62xf32, #tpu.memory_space<vmem>>, %arg6: memref<2x6xf32, #tpu.memory_space<vmem>>, %arg7: memref<2x48xf32, #tpu.memory_space<vmem>>) attributes {dimension_semantics = [], scalar_prefetch = 0 : i64, scratch_operands = 1 : i64, tpu.core_type = #tpu.core_type<tc>} {
    %c0 = arith.constant 0 : index
    %c0_0 = arith.constant 0 : index
    %0 = vector.load %arg3[%c0, %c0_0] : memref<50x96xf32, #tpu.memory_space<vmem>>, vector<16x96xf32>
    %c16 = arith.constant 16 : index
    %c0_1 = arith.constant 0 : index
    %1 = vector.load %arg3[%c16, %c0_1] : memref<50x96xf32, #tpu.memory_space<vmem>>, vector<32x96xf32>
    %c48 = arith.constant 48 : index
    %c0_2 = arith.constant 0 : index
    %2 = vector.load %arg3[%c48, %c0_2] : memref<50x96xf32, #tpu.memory_space<vmem>>, vector<1x96xf32>
    %c0_3 = arith.constant 0 : index
    %c0_4 = arith.constant 0 : index
    %3 = vector.load %arg1[%c0_3, %c0_4] : memref<16x16xf32, #tpu.memory_space<vmem>>, vector<16x16xf32>
    %cst = arith.constant dense<0.000000e+00> : vector<16x96xf32>
    %4 = tpu.matmul %3, %0, %cst {dimension_numbers = #tpu.dot_dimension_numbers<[1], [0], [0], [1], [0, 0, 1, 1], [], []>} : vector<16x16xf32>, vector<16x96xf32>, vector<16x96xf32> -> vector<16x96xf32>
    %5 = vector.broadcast %2 : vector<1x96xf32> to vector<16x96xf32>
    %6 = arith.addf %4, %5 : vector<16x96xf32>
    %c49 = arith.constant 49 : index
    %c64 = arith.constant 64 : index
    %7 = vector.load %arg3[%c49, %c64] : memref<50x96xf32, #tpu.memory_space<vmem>>, vector<1x32xf32>
    %8 = vector.shape_cast %7 : vector<1x32xf32> to vector<1x32xf32>
    %9 = vector.broadcast %8 : vector<1x32xf32> to vector<2x32xf32>
    %cst_5 = arith.constant 0.000000e+00 : f32
    %10 = vector.broadcast %cst_5 : f32 to vector<2x32xf32>
    %cst_6 = arith.constant 0.000000e+00 : f32
    %11 = vector.broadcast %cst_6 : f32 to vector<2x32xf32>
    %12 = vector.extract_strided_slice %6 {offsets = [0, 0], sizes = [2, 96], strides = [1, 1]} : vector<16x96xf32> to vector<2x96xf32>
    %cst_7 = arith.constant dense<0.000000e+00> : vector<2x96xf32>
    %13 = tpu.matmul %10, %1, %cst_7 {dimension_numbers = #tpu.dot_dimension_numbers<[1], [0], [0], [1], [0, 0, 1, 1], [], []>} : vector<2x32xf32>, vector<32x96xf32>, vector<2x96xf32> -> vector<2x96xf32>
    %14 = vector.extract_strided_slice %12 {offsets = [0, 0], sizes = [2, 32], strides = [1, 1]} : vector<2x96xf32> to vector<2x32xf32>
    %15 = vector.extract_strided_slice %13 {offsets = [0, 0], sizes = [2, 32], strides = [1, 1]} : vector<2x96xf32> to vector<2x32xf32>
    %16 = arith.addf %14, %15 : vector<2x32xf32>
    %17 = arith.negf %16 : vector<2x32xf32>
    %18 = math.exp %17 : vector<2x32xf32>
    %cst_8 = arith.constant 1.000000e+00 : f32
    %19 = vector.broadcast %cst_8 : f32 to vector<2x32xf32>
    %20 = arith.addf %19, %18 : vector<2x32xf32>
    %21 = arith.divf %19, %20 : vector<2x32xf32>
    %22 = vector.extract_strided_slice %12 {offsets = [0, 32], sizes = [2, 32], strides = [1, 1]} : vector<2x96xf32> to vector<2x32xf32>
    %23 = vector.extract_strided_slice %13 {offsets = [0, 32], sizes = [2, 32], strides = [1, 1]} : vector<2x96xf32> to vector<2x32xf32>
    %24 = arith.addf %22, %23 : vector<2x32xf32>
    %25 = arith.negf %24 : vector<2x32xf32>
    %26 = math.exp %25 : vector<2x32xf32>
    %cst_9 = arith.constant 1.000000e+00 : f32
    %27 = vector.broadcast %cst_9 : f32 to vector<2x32xf32>
    %28 = arith.addf %27, %26 : vector<2x32xf32>
    %29 = arith.divf %27, %28 : vector<2x32xf32>
    %30 = vector.extract_strided_slice %12 {offsets = [0, 64], sizes = [2, 32], strides = [1, 1]} : vector<2x96xf32> to vector<2x32xf32>
    %31 = vector.extract_strided_slice %13 {offsets = [0, 64], sizes = [2, 32], strides = [1, 1]} : vector<2x96xf32> to vector<2x32xf32>
    %32 = arith.addf %31, %9 : vector<2x32xf32>
    %33 = arith.mulf %21, %32 : vector<2x32xf32>
    %34 = arith.addf %30, %33 : vector<2x32xf32>
    %35 = math.tanh %34 : vector<2x32xf32>
    %36 = arith.subf %10, %35 : vector<2x32xf32>
    %37 = arith.mulf %29, %36 : vector<2x32xf32>
    %38 = arith.addf %35, %37 : vector<2x32xf32>
    %39 = arith.addf %11, %38 : vector<2x32xf32>
    %40 = vector.extract_strided_slice %6 {offsets = [2, 0], sizes = [2, 96], strides = [1, 1]} : vector<16x96xf32> to vector<2x96xf32>
    %cst_10 = arith.constant dense<0.000000e+00> : vector<2x96xf32>
    %41 = tpu.matmul %38, %1, %cst_10 {dimension_numbers = #tpu.dot_dimension_numbers<[1], [0], [0], [1], [0, 0, 1, 1], [], []>} : vector<2x32xf32>, vector<32x96xf32>, vector<2x96xf32> -> vector<2x96xf32>
    %42 = vector.extract_strided_slice %40 {offsets = [0, 0], sizes = [2, 32], strides = [1, 1]} : vector<2x96xf32> to vector<2x32xf32>
    %43 = vector.extract_strided_slice %41 {offsets = [0, 0], sizes = [2, 32], strides = [1, 1]} : vector<2x96xf32> to vector<2x32xf32>
    %44 = arith.addf %42, %43 : vector<2x32xf32>
    %45 = arith.negf %44 : vector<2x32xf32>
    %46 = math.exp %45 : vector<2x32xf32>
    %cst_11 = arith.constant 1.000000e+00 : f32
    %47 = vector.broadcast %cst_11 : f32 to vector<2x32xf32>
    %48 = arith.addf %47, %46 : vector<2x32xf32>
    %49 = arith.divf %47, %48 : vector<2x32xf32>
    %50 = vector.extract_strided_slice %40 {offsets = [0, 32], sizes = [2, 32], strides = [1, 1]} : vector<2x96xf32> to vector<2x32xf32>
    %51 = vector.extract_strided_slice %41 {offsets = [0, 32], sizes = [2, 32], strides = [1, 1]} : vector<2x96xf32> to vector<2x32xf32>
    %52 = arith.addf %50, %51 : vector<2x32xf32>
    %53 = arith.negf %52 : vector<2x32xf32>
    %54 = math.exp %53 : vector<2x32xf32>
    %cst_12 = arith.constant 1.000000e+00 : f32
    %55 = vector.broadcast %cst_12 : f32 to vector<2x32xf32>
    %56 = arith.addf %55, %54 : vector<2x32xf32>
    %57 = arith.divf %55, %56 : vector<2x32xf32>
    %58 = vector.extract_strided_slice %40 {offsets = [0, 64], sizes = [2, 32], strides = [1, 1]} : vector<2x96xf32> to vector<2x32xf32>
    %59 = vector.extract_strided_slice %41 {offsets = [0, 64], sizes = [2, 32], strides = [1, 1]} : vector<2x96xf32> to vector<2x32xf32>
    %60 = arith.addf %59, %9 : vector<2x32xf32>
    %61 = arith.mulf %49, %60 : vector<2x32xf32>
    %62 = arith.addf %58, %61 : vector<2x32xf32>
    %63 = math.tanh %62 : vector<2x32xf32>
    %64 = arith.subf %38, %63 : vector<2x32xf32>
    %65 = arith.mulf %57, %64 : vector<2x32xf32>
    %66 = arith.addf %63, %65 : vector<2x32xf32>
    %67 = arith.addf %39, %66 : vector<2x32xf32>
    %68 = vector.extract_strided_slice %6 {offsets = [4, 0], sizes = [2, 96], strides = [1, 1]} : vector<16x96xf32> to vector<2x96xf32>
    %cst_13 = arith.constant dense<0.000000e+00> : vector<2x96xf32>
    %69 = tpu.matmul %66, %1, %cst_13 {dimension_numbers = #tpu.dot_dimension_numbers<[1], [0], [0], [1], [0, 0, 1, 1], [], []>} : vector<2x32xf32>, vector<32x96xf32>, vector<2x96xf32> -> vector<2x96xf32>
    %70 = vector.extract_strided_slice %68 {offsets = [0, 0], sizes = [2, 32], strides = [1, 1]} : vector<2x96xf32> to vector<2x32xf32>
    %71 = vector.extract_strided_slice %69 {offsets = [0, 0], sizes = [2, 32], strides = [1, 1]} : vector<2x96xf32> to vector<2x32xf32>
    %72 = arith.addf %70, %71 : vector<2x32xf32>
    %73 = arith.negf %72 : vector<2x32xf32>
    %74 = math.exp %73 : vector<2x32xf32>
    %cst_14 = arith.constant 1.000000e+00 : f32
    %75 = vector.broadcast %cst_14 : f32 to vector<2x32xf32>
    %76 = arith.addf %75, %74 : vector<2x32xf32>
    %77 = arith.divf %75, %76 : vector<2x32xf32>
    %78 = vector.extract_strided_slice %68 {offsets = [0, 32], sizes = [2, 32], strides = [1, 1]} : vector<2x96xf32> to vector<2x32xf32>
    %79 = vector.extract_strided_slice %69 {offsets = [0, 32], sizes = [2, 32], strides = [1, 1]} : vector<2x96xf32> to vector<2x32xf32>
    %80 = arith.addf %78, %79 : vector<2x32xf32>
    %81 = arith.negf %80 : vector<2x32xf32>
    %82 = math.exp %81 : vector<2x32xf32>
    %cst_15 = arith.constant 1.000000e+00 : f32
    %83 = vector.broadcast %cst_15 : f32 to vector<2x32xf32>
    %84 = arith.addf %83, %82 : vector<2x32xf32>
    %85 = arith.divf %83, %84 : vector<2x32xf32>
    %86 = vector.extract_strided_slice %68 {offsets = [0, 64], sizes = [2, 32], strides = [1, 1]} : vector<2x96xf32> to vector<2x32xf32>
    %87 = vector.extract_strided_slice %69 {offsets = [0, 64], sizes = [2, 32], strides = [1, 1]} : vector<2x96xf32> to vector<2x32xf32>
    %88 = arith.addf %87, %9 : vector<2x32xf32>
    %89 = arith.mulf %77, %88 : vector<2x32xf32>
    %90 = arith.addf %86, %89 : vector<2x32xf32>
    %91 = math.tanh %90 : vector<2x32xf32>
    %92 = arith.subf %66, %91 : vector<2x32xf32>
    %93 = arith.mulf %85, %92 : vector<2x32xf32>
    %94 = arith.addf %91, %93 : vector<2x32xf32>
    %95 = arith.addf %67, %94 : vector<2x32xf32>
    %96 = vector.extract_strided_slice %6 {offsets = [6, 0], sizes = [2, 96], strides = [1, 1]} : vector<16x96xf32> to vector<2x96xf32>
    %cst_16 = arith.constant dense<0.000000e+00> : vector<2x96xf32>
    %97 = tpu.matmul %94, %1, %cst_16 {dimension_numbers = #tpu.dot_dimension_numbers<[1], [0], [0], [1], [0, 0, 1, 1], [], []>} : vector<2x32xf32>, vector<32x96xf32>, vector<2x96xf32> -> vector<2x96xf32>
    %98 = vector.extract_strided_slice %96 {offsets = [0, 0], sizes = [2, 32], strides = [1, 1]} : vector<2x96xf32> to vector<2x32xf32>
    %99 = vector.extract_strided_slice %97 {offsets = [0, 0], sizes = [2, 32], strides = [1, 1]} : vector<2x96xf32> to vector<2x32xf32>
    %100 = arith.addf %98, %99 : vector<2x32xf32>
    %101 = arith.negf %100 : vector<2x32xf32>
    %102 = math.exp %101 : vector<2x32xf32>
    %cst_17 = arith.constant 1.000000e+00 : f32
    %103 = vector.broadcast %cst_17 : f32 to vector<2x32xf32>
    %104 = arith.addf %103, %102 : vector<2x32xf32>
    %105 = arith.divf %103, %104 : vector<2x32xf32>
    %106 = vector.extract_strided_slice %96 {offsets = [0, 32], sizes = [2, 32], strides = [1, 1]} : vector<2x96xf32> to vector<2x32xf32>
    %107 = vector.extract_strided_slice %97 {offsets = [0, 32], sizes = [2, 32], strides = [1, 1]} : vector<2x96xf32> to vector<2x32xf32>
    %108 = arith.addf %106, %107 : vector<2x32xf32>
    %109 = arith.negf %108 : vector<2x32xf32>
    %110 = math.exp %109 : vector<2x32xf32>
    %cst_18 = arith.constant 1.000000e+00 : f32
    %111 = vector.broadcast %cst_18 : f32 to vector<2x32xf32>
    %112 = arith.addf %111, %110 : vector<2x32xf32>
    %113 = arith.divf %111, %112 : vector<2x32xf32>
    %114 = vector.extract_strided_slice %96 {offsets = [0, 64], sizes = [2, 32], strides = [1, 1]} : vector<2x96xf32> to vector<2x32xf32>
    %115 = vector.extract_strided_slice %97 {offsets = [0, 64], sizes = [2, 32], strides = [1, 1]} : vector<2x96xf32> to vector<2x32xf32>
    %116 = arith.addf %115, %9 : vector<2x32xf32>
    %117 = arith.mulf %105, %116 : vector<2x32xf32>
    %118 = arith.addf %114, %117 : vector<2x32xf32>
    %119 = math.tanh %118 : vector<2x32xf32>
    %120 = arith.subf %94, %119 : vector<2x32xf32>
    %121 = arith.mulf %113, %120 : vector<2x32xf32>
    %122 = arith.addf %119, %121 : vector<2x32xf32>
    %123 = arith.addf %95, %122 : vector<2x32xf32>
    %124 = vector.extract_strided_slice %6 {offsets = [8, 0], sizes = [2, 96], strides = [1, 1]} : vector<16x96xf32> to vector<2x96xf32>
    %cst_19 = arith.constant dense<0.000000e+00> : vector<2x96xf32>
    %125 = tpu.matmul %122, %1, %cst_19 {dimension_numbers = #tpu.dot_dimension_numbers<[1], [0], [0], [1], [0, 0, 1, 1], [], []>} : vector<2x32xf32>, vector<32x96xf32>, vector<2x96xf32> -> vector<2x96xf32>
    %126 = vector.extract_strided_slice %124 {offsets = [0, 0], sizes = [2, 32], strides = [1, 1]} : vector<2x96xf32> to vector<2x32xf32>
    %127 = vector.extract_strided_slice %125 {offsets = [0, 0], sizes = [2, 32], strides = [1, 1]} : vector<2x96xf32> to vector<2x32xf32>
    %128 = arith.addf %126, %127 : vector<2x32xf32>
    %129 = arith.negf %128 : vector<2x32xf32>
    %130 = math.exp %129 : vector<2x32xf32>
    %cst_20 = arith.constant 1.000000e+00 : f32
    %131 = vector.broadcast %cst_20 : f32 to vector<2x32xf32>
    %132 = arith.addf %131, %130 : vector<2x32xf32>
    %133 = arith.divf %131, %132 : vector<2x32xf32>
    %134 = vector.extract_strided_slice %124 {offsets = [0, 32], sizes = [2, 32], strides = [1, 1]} : vector<2x96xf32> to vector<2x32xf32>
    %135 = vector.extract_strided_slice %125 {offsets = [0, 32], sizes = [2, 32], strides = [1, 1]} : vector<2x96xf32> to vector<2x32xf32>
    %136 = arith.addf %134, %135 : vector<2x32xf32>
    %137 = arith.negf %136 : vector<2x32xf32>
    %138 = math.exp %137 : vector<2x32xf32>
    %cst_21 = arith.constant 1.000000e+00 : f32
    %139 = vector.broadcast %cst_21 : f32 to vector<2x32xf32>
    %140 = arith.addf %139, %138 : vector<2x32xf32>
    %141 = arith.divf %139, %140 : vector<2x32xf32>
    %142 = vector.extract_strided_slice %124 {offsets = [0, 64], sizes = [2, 32], strides = [1, 1]} : vector<2x96xf32> to vector<2x32xf32>
    %143 = vector.extract_strided_slice %125 {offsets = [0, 64], sizes = [2, 32], strides = [1, 1]} : vector<2x96xf32> to vector<2x32xf32>
    %144 = arith.addf %143, %9 : vector<2x32xf32>
    %145 = arith.mulf %133, %144 : vector<2x32xf32>
    %146 = arith.addf %142, %145 : vector<2x32xf32>
    %147 = math.tanh %146 : vector<2x32xf32>
    %148 = arith.subf %122, %147 : vector<2x32xf32>
    %149 = arith.mulf %141, %148 : vector<2x32xf32>
    %150 = arith.addf %147, %149 : vector<2x32xf32>
    %151 = arith.addf %123, %150 : vector<2x32xf32>
    %152 = vector.extract_strided_slice %6 {offsets = [10, 0], sizes = [2, 96], strides = [1, 1]} : vector<16x96xf32> to vector<2x96xf32>
    %cst_22 = arith.constant dense<0.000000e+00> : vector<2x96xf32>
    %153 = tpu.matmul %150, %1, %cst_22 {dimension_numbers = #tpu.dot_dimension_numbers<[1], [0], [0], [1], [0, 0, 1, 1], [], []>} : vector<2x32xf32>, vector<32x96xf32>, vector<2x96xf32> -> vector<2x96xf32>
    %154 = vector.extract_strided_slice %152 {offsets = [0, 0], sizes = [2, 32], strides = [1, 1]} : vector<2x96xf32> to vector<2x32xf32>
    %155 = vector.extract_strided_slice %153 {offsets = [0, 0], sizes = [2, 32], strides = [1, 1]} : vector<2x96xf32> to vector<2x32xf32>
    %156 = arith.addf %154, %155 : vector<2x32xf32>
    %157 = arith.negf %156 : vector<2x32xf32>
    %158 = math.exp %157 : vector<2x32xf32>
    %cst_23 = arith.constant 1.000000e+00 : f32
    %159 = vector.broadcast %cst_23 : f32 to vector<2x32xf32>
    %160 = arith.addf %159, %158 : vector<2x32xf32>
    %161 = arith.divf %159, %160 : vector<2x32xf32>
    %162 = vector.extract_strided_slice %152 {offsets = [0, 32], sizes = [2, 32], strides = [1, 1]} : vector<2x96xf32> to vector<2x32xf32>
    %163 = vector.extract_strided_slice %153 {offsets = [0, 32], sizes = [2, 32], strides = [1, 1]} : vector<2x96xf32> to vector<2x32xf32>
    %164 = arith.addf %162, %163 : vector<2x32xf32>
    %165 = arith.negf %164 : vector<2x32xf32>
    %166 = math.exp %165 : vector<2x32xf32>
    %cst_24 = arith.constant 1.000000e+00 : f32
    %167 = vector.broadcast %cst_24 : f32 to vector<2x32xf32>
    %168 = arith.addf %167, %166 : vector<2x32xf32>
    %169 = arith.divf %167, %168 : vector<2x32xf32>
    %170 = vector.extract_strided_slice %152 {offsets = [0, 64], sizes = [2, 32], strides = [1, 1]} : vector<2x96xf32> to vector<2x32xf32>
    %171 = vector.extract_strided_slice %153 {offsets = [0, 64], sizes = [2, 32], strides = [1, 1]} : vector<2x96xf32> to vector<2x32xf32>
    %172 = arith.addf %171, %9 : vector<2x32xf32>
    %173 = arith.mulf %161, %172 : vector<2x32xf32>
    %174 = arith.addf %170, %173 : vector<2x32xf32>
    %175 = math.tanh %174 : vector<2x32xf32>
    %176 = arith.subf %150, %175 : vector<2x32xf32>
    %177 = arith.mulf %169, %176 : vector<2x32xf32>
    %178 = arith.addf %175, %177 : vector<2x32xf32>
    %179 = arith.addf %151, %178 : vector<2x32xf32>
    %180 = vector.extract_strided_slice %6 {offsets = [12, 0], sizes = [2, 96], strides = [1, 1]} : vector<16x96xf32> to vector<2x96xf32>
    %cst_25 = arith.constant dense<0.000000e+00> : vector<2x96xf32>
    %181 = tpu.matmul %178, %1, %cst_25 {dimension_numbers = #tpu.dot_dimension_numbers<[1], [0], [0], [1], [0, 0, 1, 1], [], []>} : vector<2x32xf32>, vector<32x96xf32>, vector<2x96xf32> -> vector<2x96xf32>
    %182 = vector.extract_strided_slice %180 {offsets = [0, 0], sizes = [2, 32], strides = [1, 1]} : vector<2x96xf32> to vector<2x32xf32>
    %183 = vector.extract_strided_slice %181 {offsets = [0, 0], sizes = [2, 32], strides = [1, 1]} : vector<2x96xf32> to vector<2x32xf32>
    %184 = arith.addf %182, %183 : vector<2x32xf32>
    %185 = arith.negf %184 : vector<2x32xf32>
    %186 = math.exp %185 : vector<2x32xf32>
    %cst_26 = arith.constant 1.000000e+00 : f32
    %187 = vector.broadcast %cst_26 : f32 to vector<2x32xf32>
    %188 = arith.addf %187, %186 : vector<2x32xf32>
    %189 = arith.divf %187, %188 : vector<2x32xf32>
    %190 = vector.extract_strided_slice %180 {offsets = [0, 32], sizes = [2, 32], strides = [1, 1]} : vector<2x96xf32> to vector<2x32xf32>
    %191 = vector.extract_strided_slice %181 {offsets = [0, 32], sizes = [2, 32], strides = [1, 1]} : vector<2x96xf32> to vector<2x32xf32>
    %192 = arith.addf %190, %191 : vector<2x32xf32>
    %193 = arith.negf %192 : vector<2x32xf32>
    %194 = math.exp %193 : vector<2x32xf32>
    %cst_27 = arith.constant 1.000000e+00 : f32
    %195 = vector.broadcast %cst_27 : f32 to vector<2x32xf32>
    %196 = arith.addf %195, %194 : vector<2x32xf32>
    %197 = arith.divf %195, %196 : vector<2x32xf32>
    %198 = vector.extract_strided_slice %180 {offsets = [0, 64], sizes = [2, 32], strides = [1, 1]} : vector<2x96xf32> to vector<2x32xf32>
    %199 = vector.extract_strided_slice %181 {offsets = [0, 64], sizes = [2, 32], strides = [1, 1]} : vector<2x96xf32> to vector<2x32xf32>
    %200 = arith.addf %199, %9 : vector<2x32xf32>
    %201 = arith.mulf %189, %200 : vector<2x32xf32>
    %202 = arith.addf %198, %201 : vector<2x32xf32>
    %203 = math.tanh %202 : vector<2x32xf32>
    %204 = arith.subf %178, %203 : vector<2x32xf32>
    %205 = arith.mulf %197, %204 : vector<2x32xf32>
    %206 = arith.addf %203, %205 : vector<2x32xf32>
    %207 = arith.addf %179, %206 : vector<2x32xf32>
    %208 = vector.extract_strided_slice %6 {offsets = [14, 0], sizes = [2, 96], strides = [1, 1]} : vector<16x96xf32> to vector<2x96xf32>
    %cst_28 = arith.constant dense<0.000000e+00> : vector<2x96xf32>
    %209 = tpu.matmul %206, %1, %cst_28 {dimension_numbers = #tpu.dot_dimension_numbers<[1], [0], [0], [1], [0, 0, 1, 1], [], []>} : vector<2x32xf32>, vector<32x96xf32>, vector<2x96xf32> -> vector<2x96xf32>
    %210 = vector.extract_strided_slice %208 {offsets = [0, 0], sizes = [2, 32], strides = [1, 1]} : vector<2x96xf32> to vector<2x32xf32>
    %211 = vector.extract_strided_slice %209 {offsets = [0, 0], sizes = [2, 32], strides = [1, 1]} : vector<2x96xf32> to vector<2x32xf32>
    %212 = arith.addf %210, %211 : vector<2x32xf32>
    %213 = arith.negf %212 : vector<2x32xf32>
    %214 = math.exp %213 : vector<2x32xf32>
    %cst_29 = arith.constant 1.000000e+00 : f32
    %215 = vector.broadcast %cst_29 : f32 to vector<2x32xf32>
    %216 = arith.addf %215, %214 : vector<2x32xf32>
    %217 = arith.divf %215, %216 : vector<2x32xf32>
    %218 = vector.extract_strided_slice %208 {offsets = [0, 32], sizes = [2, 32], strides = [1, 1]} : vector<2x96xf32> to vector<2x32xf32>
    %219 = vector.extract_strided_slice %209 {offsets = [0, 32], sizes = [2, 32], strides = [1, 1]} : vector<2x96xf32> to vector<2x32xf32>
    %220 = arith.addf %218, %219 : vector<2x32xf32>
    %221 = arith.negf %220 : vector<2x32xf32>
    %222 = math.exp %221 : vector<2x32xf32>
    %cst_30 = arith.constant 1.000000e+00 : f32
    %223 = vector.broadcast %cst_30 : f32 to vector<2x32xf32>
    %224 = arith.addf %223, %222 : vector<2x32xf32>
    %225 = arith.divf %223, %224 : vector<2x32xf32>
    %226 = vector.extract_strided_slice %208 {offsets = [0, 64], sizes = [2, 32], strides = [1, 1]} : vector<2x96xf32> to vector<2x32xf32>
    %227 = vector.extract_strided_slice %209 {offsets = [0, 64], sizes = [2, 32], strides = [1, 1]} : vector<2x96xf32> to vector<2x32xf32>
    %228 = arith.addf %227, %9 : vector<2x32xf32>
    %229 = arith.mulf %217, %228 : vector<2x32xf32>
    %230 = arith.addf %226, %229 : vector<2x32xf32>
    %231 = math.tanh %230 : vector<2x32xf32>
    %232 = arith.subf %206, %231 : vector<2x32xf32>
    %233 = arith.mulf %225, %232 : vector<2x32xf32>
    %234 = arith.addf %231, %233 : vector<2x32xf32>
    %235 = arith.addf %207, %234 : vector<2x32xf32>
    %cst_31 = arith.constant 1.250000e-01 : f32
    %236 = vector.broadcast %cst_31 : f32 to vector<2x32xf32>
    %237 = arith.mulf %235, %236 : vector<2x32xf32>
    %c0_32 = arith.constant 0 : index
    %c0_33 = arith.constant 0 : index
    %238 = memref.load %arg0[%c0_32, %c0_33] : memref<2x4xi32, #tpu.memory_space<smem>>
    %239 = arith.index_cast %238 : i32 to index
    %c0_34 = arith.constant 0 : index
    %240 = vector.load %arg4[%239, %c0_34] : memref<28x24xf32, #tpu.memory_space<vmem>>, vector<1x24xf32>
    %c0_35 = arith.constant 0 : index
    %c0_36 = arith.constant 0 : index
    %241 = vector.load %arg7[%c0_35, %c0_36] : memref<2x48xf32, #tpu.memory_space<vmem>>, vector<1x24xf32>
    tpu.vector_store %arg7[%c0_35, %c0_36], %240 {strides = array<i32>} : memref<2x48xf32, #tpu.memory_space<vmem>>, vector<1x24xf32>,
    %c0_37 = arith.constant 0 : index
    %c1 = arith.constant 1 : index
    %242 = memref.load %arg0[%c0_37, %c1] : memref<2x4xi32, #tpu.memory_space<smem>>
    %c10_i32 = arith.constant 10 : i32
    %243 = arith.addi %242, %c10_i32 : i32
    %244 = arith.index_cast %243 : i32 to index
    %c0_38 = arith.constant 0 : index
    %245 = vector.load %arg4[%244, %c0_38] : memref<28x24xf32, #tpu.memory_space<vmem>>, vector<1x8xf32>
    %c0_39 = arith.constant 0 : index
    %c24 = arith.constant 24 : index
    %246 = vector.load %arg7[%c0_39, %c24] : memref<2x48xf32, #tpu.memory_space<vmem>>, vector<1x8xf32>
    tpu.vector_store %arg7[%c0_39, %c24], %245 {strides = array<i32>} : memref<2x48xf32, #tpu.memory_space<vmem>>, vector<1x8xf32>,
    %c0_40 = arith.constant 0 : index
    %c2 = arith.constant 2 : index
    %247 = memref.load %arg0[%c0_40, %c2] : memref<2x4xi32, #tpu.memory_space<smem>>
    %c15_i32 = arith.constant 15 : i32
    %248 = arith.addi %247, %c15_i32 : i32
    %249 = arith.index_cast %248 : i32 to index
    %c0_41 = arith.constant 0 : index
    %250 = vector.load %arg4[%249, %c0_41] : memref<28x24xf32, #tpu.memory_space<vmem>>, vector<1x8xf32>
    %c0_42 = arith.constant 0 : index
    %c32 = arith.constant 32 : index
    %251 = vector.load %arg7[%c0_42, %c32] : memref<2x48xf32, #tpu.memory_space<vmem>>, vector<1x8xf32>
    tpu.vector_store %arg7[%c0_42, %c32], %250 {strides = array<i32>} : memref<2x48xf32, #tpu.memory_space<vmem>>, vector<1x8xf32>,
    %c0_43 = arith.constant 0 : index
    %c3 = arith.constant 3 : index
    %252 = memref.load %arg0[%c0_43, %c3] : memref<2x4xi32, #tpu.memory_space<smem>>
    %c22_i32 = arith.constant 22 : i32
    %253 = arith.addi %252, %c22_i32 : i32
    %254 = arith.index_cast %253 : i32 to index
    %c0_44 = arith.constant 0 : index
    %255 = vector.load %arg4[%254, %c0_44] : memref<28x24xf32, #tpu.memory_space<vmem>>, vector<1x8xf32>
    %c0_45 = arith.constant 0 : index
    %c40 = arith.constant 40 : index
    %256 = vector.load %arg7[%c0_45, %c40] : memref<2x48xf32, #tpu.memory_space<vmem>>, vector<1x8xf32>
    tpu.vector_store %arg7[%c0_45, %c40], %255 {strides = array<i32>} : memref<2x48xf32, #tpu.memory_space<vmem>>, vector<1x8xf32>,
    %c1_46 = arith.constant 1 : index
    %c0_47 = arith.constant 0 : index
    %257 = memref.load %arg0[%c1_46, %c0_47] : memref<2x4xi32, #tpu.memory_space<smem>>
    %258 = arith.index_cast %257 : i32 to index
    %c0_48 = arith.constant 0 : index
    %259 = vector.load %arg4[%258, %c0_48] : memref<28x24xf32, #tpu.memory_space<vmem>>, vector<1x24xf32>
    %c1_49 = arith.constant 1 : index
    %c0_50 = arith.constant 0 : index
    %260 = vector.load %arg7[%c1_49, %c0_50] : memref<2x48xf32, #tpu.memory_space<vmem>>, vector<1x24xf32>
    tpu.vector_store %arg7[%c1_49, %c0_50], %259 {strides = array<i32>} : memref<2x48xf32, #tpu.memory_space<vmem>>, vector<1x24xf32>,
    %c1_51 = arith.constant 1 : index
    %c1_52 = arith.constant 1 : index
    %261 = memref.load %arg0[%c1_51, %c1_52] : memref<2x4xi32, #tpu.memory_space<smem>>
    %c10_i32_53 = arith.constant 10 : i32
    %262 = arith.addi %261, %c10_i32_53 : i32
    %263 = arith.index_cast %262 : i32 to index
    %c0_54 = arith.constant 0 : index
    %264 = vector.load %arg4[%263, %c0_54] : memref<28x24xf32, #tpu.memory_space<vmem>>, vector<1x8xf32>
    %c1_55 = arith.constant 1 : index
    %c24_56 = arith.constant 24 : index
    %265 = vector.load %arg7[%c1_55, %c24_56] : memref<2x48xf32, #tpu.memory_space<vmem>>, vector<1x8xf32>
    tpu.vector_store %arg7[%c1_55, %c24_56], %264 {strides = array<i32>} : memref<2x48xf32, #tpu.memory_space<vmem>>, vector<1x8xf32>,
    %c1_57 = arith.constant 1 : index
    %c2_58 = arith.constant 2 : index
    %266 = memref.load %arg0[%c1_57, %c2_58] : memref<2x4xi32, #tpu.memory_space<smem>>
    %c15_i32_59 = arith.constant 15 : i32
    %267 = arith.addi %266, %c15_i32_59 : i32
    %268 = arith.index_cast %267 : i32 to index
    %c0_60 = arith.constant 0 : index
    %269 = vector.load %arg4[%268, %c0_60] : memref<28x24xf32, #tpu.memory_space<vmem>>, vector<1x8xf32>
    %c1_61 = arith.constant 1 : index
    %c32_62 = arith.constant 32 : index
    %270 = vector.load %arg7[%c1_61, %c32_62] : memref<2x48xf32, #tpu.memory_space<vmem>>, vector<1x8xf32>
    tpu.vector_store %arg7[%c1_61, %c32_62], %269 {strides = array<i32>} : memref<2x48xf32, #tpu.memory_space<vmem>>, vector<1x8xf32>,
    %c1_63 = arith.constant 1 : index
    %c3_64 = arith.constant 3 : index
    %271 = memref.load %arg0[%c1_63, %c3_64] : memref<2x4xi32, #tpu.memory_space<smem>>
    %c22_i32_65 = arith.constant 22 : i32
    %272 = arith.addi %271, %c22_i32_65 : i32
    %273 = arith.index_cast %272 : i32 to index
    %c0_66 = arith.constant 0 : index
    %274 = vector.load %arg4[%273, %c0_66] : memref<28x24xf32, #tpu.memory_space<vmem>>, vector<1x8xf32>
    %c1_67 = arith.constant 1 : index
    %c40_68 = arith.constant 40 : index
    %275 = vector.load %arg7[%c1_67, %c40_68] : memref<2x48xf32, #tpu.memory_space<vmem>>, vector<1x8xf32>
    tpu.vector_store %arg7[%c1_67, %c40_68], %274 {strides = array<i32>} : memref<2x48xf32, #tpu.memory_space<vmem>>, vector<1x8xf32>,
    %c0_69 = arith.constant 0 : index
    %c0_70 = arith.constant 0 : index
    %276 = vector.load %arg7[%c0_69, %c0_70] : memref<2x48xf32, #tpu.memory_space<vmem>>, vector<2x48xf32>
    %c0_71 = arith.constant 0 : index
    %c0_72 = arith.constant 0 : index
    %277 = vector.load %arg5[%c0_71, %c0_72] : memref<97x62xf32, #tpu.memory_space<vmem>>, vector<48x32xf32>
    %cst_73 = arith.constant dense<0.000000e+00> : vector<2x32xf32>
    %278 = tpu.matmul %276, %277, %cst_73 {dimension_numbers = #tpu.dot_dimension_numbers<[1], [0], [0], [1], [0, 0, 1, 1], [], []>} : vector<2x48xf32>, vector<48x32xf32>, vector<2x32xf32> -> vector<2x32xf32>
    %c60 = arith.constant 60 : index
    %c0_74 = arith.constant 0 : index
    %279 = vector.load %arg5[%c60, %c0_74] : memref<97x62xf32, #tpu.memory_space<vmem>>, vector<1x32xf32>
    %280 = vector.broadcast %279 : vector<1x32xf32> to vector<2x32xf32>
    %281 = arith.addf %278, %280 : vector<2x32xf32>
    %282 = arith.mulf %281, %281 : vector<2x32xf32>
    %cst_75 = arith.constant dense<0.000000e+00> : vector<2xf32>
    %283 = vector.multi_reduction <add>, %282, %cst_75 [1] : vector<2x32xf32> to vector<2xf32>
    %284 = vector.shape_cast %283 : vector<2xf32> to vector<2x1xf32>
    %cst_76 = arith.constant 1.000000e-24 : f32
    %285 = vector.broadcast %cst_76 : f32 to vector<2x1xf32>
    %286 = arith.maximumf %284, %285 : vector<2x1xf32>
    %287 = math.sqrt %286 : vector<2x1xf32>
    %288 = vector.broadcast %287 : vector<2x1xf32> to vector<2x32xf32>
    %289 = arith.divf %281, %288 : vector<2x32xf32>
    %c0_77 = arith.constant 0 : index
    %c0_78 = arith.constant 0 : index
    %290 = vector.load %arg2[%c0_77, %c0_78] : memref<2x12xf32, #tpu.memory_space<vmem>>, vector<2x12xf32>
    %c48_79 = arith.constant 48 : index
    %c0_80 = arith.constant 0 : index
    %291 = vector.load %arg5[%c48_79, %c0_80] : memref<97x62xf32, #tpu.memory_space<vmem>>, vector<12x32xf32>
    %cst_81 = arith.constant dense<0.000000e+00> : vector<2x32xf32>
    %292 = tpu.matmul %290, %291, %cst_81 {dimension_numbers = #tpu.dot_dimension_numbers<[1], [0], [0], [1], [0, 0, 1, 1], [], []>} : vector<2x12xf32>, vector<12x32xf32>, vector<2x32xf32> -> vector<2x32xf32>
    %c61 = arith.constant 61 : index
    %c0_82 = arith.constant 0 : index
    %293 = vector.load %arg5[%c61, %c0_82] : memref<97x62xf32, #tpu.memory_space<vmem>>, vector<1x32xf32>
    %294 = vector.broadcast %293 : vector<1x32xf32> to vector<2x32xf32>
    %295 = arith.addf %292, %294 : vector<2x32xf32>
    %c0_83 = arith.constant 0 : index
    %c32_84 = arith.constant 32 : index
    %296 = vector.load %arg5[%c0_83, %c32_84] : memref<97x62xf32, #tpu.memory_space<vmem>>, vector<32x24xf32>
    %cst_85 = arith.constant dense<0.000000e+00> : vector<2x24xf32>
    %297 = tpu.matmul %237, %296, %cst_85 {dimension_numbers = #tpu.dot_dimension_numbers<[1], [0], [0], [1], [0, 0, 1, 1], [], []>} : vector<2x32xf32>, vector<32x24xf32>, vector<2x24xf32> -> vector<2x24xf32>
    %c32_86 = arith.constant 32 : index
    %c32_87 = arith.constant 32 : index
    %298 = vector.load %arg5[%c32_86, %c32_87] : memref<97x62xf32, #tpu.memory_space<vmem>>, vector<32x24xf32>
    %cst_88 = arith.constant dense<0.000000e+00> : vector<2x24xf32>
    %299 = tpu.matmul %289, %298, %cst_88 {dimension_numbers = #tpu.dot_dimension_numbers<[1], [0], [0], [1], [0, 0, 1, 1], [], []>} : vector<2x32xf32>, vector<32x24xf32>, vector<2x24xf32> -> vector<2x24xf32>
    %300 = arith.addf %297, %299 : vector<2x24xf32>
    %c64_89 = arith.constant 64 : index
    %c32_90 = arith.constant 32 : index
    %301 = vector.load %arg5[%c64_89, %c32_90] : memref<97x62xf32, #tpu.memory_space<vmem>>, vector<32x24xf32>
    %cst_91 = arith.constant dense<0.000000e+00> : vector<2x24xf32>
    %302 = tpu.matmul %295, %301, %cst_91 {dimension_numbers = #tpu.dot_dimension_numbers<[1], [0], [0], [1], [0, 0, 1, 1], [], []>} : vector<2x32xf32>, vector<32x24xf32>, vector<2x24xf32> -> vector<2x24xf32>
    %303 = arith.addf %300, %302 : vector<2x24xf32>
    %c96 = arith.constant 96 : index
    %c32_92 = arith.constant 32 : index
    %304 = vector.load %arg5[%c96, %c32_92] : memref<97x62xf32, #tpu.memory_space<vmem>>, vector<1x24xf32>
    %305 = vector.broadcast %304 : vector<1x24xf32> to vector<2x24xf32>
    %306 = arith.addf %303, %305 : vector<2x24xf32>
    %cst_93 = arith.constant 0.000000e+00 : f32
    %307 = vector.broadcast %cst_93 : f32 to vector<2x24xf32>
    %308 = arith.maximumf %306, %307 : vector<2x24xf32>
    %c0_94 = arith.constant 0 : index
    %c56 = arith.constant 56 : index
    %309 = vector.load %arg5[%c0_94, %c56] : memref<97x62xf32, #tpu.memory_space<vmem>>, vector<24x6xf32>
    %cst_95 = arith.constant dense<0.000000e+00> : vector<2x6xf32>
    %310 = tpu.matmul %308, %309, %cst_95 {dimension_numbers = #tpu.dot_dimension_numbers<[1], [0], [0], [1], [0, 0, 1, 1], [], []>} : vector<2x24xf32>, vector<24x6xf32>, vector<2x6xf32> -> vector<2x6xf32>
    %c24_96 = arith.constant 24 : index
    %c56_97 = arith.constant 56 : index
    %311 = vector.load %arg5[%c24_96, %c56_97] : memref<97x62xf32, #tpu.memory_space<vmem>>, vector<1x6xf32>
    %312 = vector.broadcast %311 : vector<1x6xf32> to vector<2x6xf32>
    %313 = arith.addf %310, %312 : vector<2x6xf32>
    %c0_98 = arith.constant 0 : index
    %c0_99 = arith.constant 0 : index
    %314 = vector.load %arg6[%c0_98, %c0_99] : memref<2x6xf32, #tpu.memory_space<vmem>>, vector<2x6xf32>
    tpu.vector_store %arg6[%c0_98, %c0_99], %313 {strides = array<i32>} : memref<2x6xf32, #tpu.memory_space<vmem>>, vector<2x6xf32>,
    return
  }
}

</mosaic_0001>

<llo_original>
// kernel: multi_label_model_forward.1
$region0: #{multi_label_model_forward.1}
  #allocation0 [shape = 'u32[]', space=smem, size = 0x4, offset = 0x4, fixed_abs, tag = 'smem constant byte address 0x4 - core index']
  #allocation1 [shape = 'u32[144,128]{1,0:T(1,128)}', space=vmem, size = 0x12000, scoped, tag = 'internal scratch']
  #allocation2 [shape = 'f32[2,48]{1,0:T(2,128)}', space=vmem, size = 0x400, scoped, tag = 'scratch operand']
  %s0 = inlined_call_operand.vmem [shape: s32[2,4], index: 0, kind: input, shape index: {}]
  %s1 = inlined_call_operand.vmem [shape: f32[16,16], index: 1, kind: input, shape index: {}]
  %s2 = inlined_call_operand.vmem [shape: f32[2,12], index: 2, kind: input, shape index: {}]
  %s3 = inlined_call_operand.vmem [shape: f32[50,96], index: 3, kind: input, shape index: {}]
  %s4 = inlined_call_operand.vmem [shape: f32[28,24], index: 4, kind: input, shape index: {}]
  %s5 = inlined_call_operand.vmem [shape: f32[97,62], index: 5, kind: input, shape index: {}]
  %s6 = inlined_call_operand.hbm [shape: f32[2,6], index: 6, kind: output, shape index: {}]
  %s7 = sld [smem:[#allocation0]]
  $region38: #{multi_label_model_forward.1} parent=0
    _
  %s9 = ssub.s32 1, %s7
  %s10 = scalar_select 0, %s9, %s7
  $region1: #{multi_label_model_forward.1} parent=0
    #allocation3 [shape = 'u8[1024]{0}', space=smem, size = 0x400, scoped, tag = 'input window, operand 0, single buffered']
    #allocation4 [shape = 's32[1]{0}', space=sflag, size = 0x4, scoped, tag = 'scoped memory for multi_label_model_forward.1']
    #allocation5 [shape = 's32[1]{0}', space=sflag, size = 0x4, scoped, tag = 'scoped memory for multi_label_model_forward.1']
    #allocation6 [shape = 'u8[1024]{0}', space=vmem, size = 0x400, scoped, tag = 'output window, operand 0, single buffered']
    %11 = vsyncpa [#allocation5], 0
    %12 = vsyncpa [#allocation4], 0
    // Predicated region
    $region2: #{multi_label_model_forward.1} parent=1 // pred_check
      _
    $region3: #{multi_label_model_forward.1} parent=1 // pred_check_branch
      %14 = sbr.rel (0) target = $region5
    $region4: #{multi_label_model_forward.1} parent=1 // pred_region
      %s16 = ssub.s32 32, 32
      %17 = vsyncadd [#allocation5], %s16
      %s19 = sshll.u32 %s0, 4
      %s20 = int_to_ptr.vmem [resolvable:$true] %s19
      %22 = dma.vmem_to_smem %s20, 32, [#allocation3], [#allocation5]
    $region5: #{multi_label_model_forward.1} parent=1 // pred_fallthru
      _
    // Predicated region
    $region6: #{multi_label_model_forward.1} parent=1 // pred_check
      _
    $region7: #{multi_label_model_forward.1} parent=1 // pred_check_branch
      %24 = sbr.rel (0) target = $region9
    $region8: #{multi_label_model_forward.1} parent=1 // pred_region
      _
    $region9: #{multi_label_model_forward.1} parent=1 // pred_fallthru
      _
    // Predicated region
    $region10: #{multi_label_model_forward.1} parent=1 // pred_check
      _
    $region11: #{multi_label_model_forward.1} parent=1 // pred_check_branch
      %26 = sbr.rel (0) target = $region13
    $region12: #{multi_label_model_forward.1} parent=1 // pred_region
      _
    $region13: #{multi_label_model_forward.1} parent=1 // pred_fallthru
      _
    // Predicated region
    $region14: #{multi_label_model_forward.1} parent=1 // pred_check
      _
    $region15: #{multi_label_model_forward.1} parent=1 // pred_check_branch
      %28 = sbr.rel (0) target = $region17
    $region16: #{multi_label_model_forward.1} parent=1 // pred_region
      _
    $region17: #{multi_label_model_forward.1} parent=1 // pred_fallthru
      _
    // Predicated region
    $region18: #{multi_label_model_forward.1} parent=1 // pred_check
      _
    $region19: #{multi_label_model_forward.1} parent=1 // pred_check_branch
      %30 = sbr.rel (0) target = $region21
    $region20: #{multi_label_model_forward.1} parent=1 // pred_region
      _
    $region21: #{multi_label_model_forward.1} parent=1 // pred_fallthru
      _
    // Predicated region
    $region22: #{multi_label_model_forward.1} parent=1 // pred_check
      _
    $region23: #{multi_label_model_forward.1} parent=1 // pred_check_branch
      %32 = sbr.rel (0) target = $region25
    $region24: #{multi_label_model_forward.1} parent=1 // pred_region
      _
    $region25: #{multi_label_model_forward.1} parent=1 // pred_fallthru
      _
    // Predicated region
    $region26: #{multi_label_model_forward.1} parent=1 // pred_check
      _
    $region27: #{multi_label_model_forward.1} parent=1 // pred_check_branch
      %34 = sbr.rel (0) target = $region29
    $region28: #{multi_label_model_forward.1} parent=1 // pred_region
      %35 = dma.done [#allocation5], 32
    $region29: #{multi_label_model_forward.1} parent=1 // pred_fallthru
      _
    %36 = sfence
    %v37 = vld [vmem:[%s3] sm:$0xff]
    %v38 = vld [vmem:[%s3 + $0x8] sm:$0xff]
    %v39 = vld [vmem:[%s3 + $0x10] sm:$0xff]
    %v40 = vld [vmem:[%s3 + $0x18] sm:$0xff]
    %v41 = vld [vmem:[%s3 + $0x20] sm:$0xff]
    %v42 = vld [vmem:[%s3 + $0x28] sm:$0xff]
    %v43 = vld [vmem:[%s3 + $0x30] sm:$0x1]
    %v44 = vld [vmem:[%s1] sm:$0xff]
    %v45 = vld [vmem:[%s1 + $0x8] sm:$0xff]
    %v46 = vlaneseq
    %v47 = vshrl.u32 %v46, 7
    %v48 = vsub.s32 0, %v47
    %v49 = vrot.slane %v43, %v48
    %vm50 = vcmask 130048
    %v52 = vsel %vm50, %v44, 0
    %v55 = vsel %vm50, %v45, 0
    %57 = vmatprep.subr.mxu0 0.0
    %58 = vmatpush1.msra.mxu0 %v37
    %59 = vmatprep.subr.mxu0 0.0
    %60 = vmatpush1.msra.mxu0 %v38
    %61 = vmatprep.subr.mxu0 0.0
    %62 = vmatpush1.msra.mxu0 0.0
    %63 = vmatprep.subr.mxu0 0.0
    %64 = vmatpush1.msra.mxu0 0.0
    %65 = vmatprep.subr.mxu0 0.0
    %66 = vmatpush1.msra.mxu0 0.0
    %67 = vmatprep.subr.mxu0 0.0
    %68 = vmatpush1.msra.mxu0 0.0
    %69 = vmatprep.subr.mxu0 0.0
    %70 = vmatpush1.msra.mxu0 0.0
    %71 = vmatprep.subr.mxu0 0.0
    %72 = vmatpush1.msra.mxu0 0.0
    %73 = vmatprep.subr.mxu0 0.0
    %74 = vmatpush1.msra.mxu0 0.0
    %75 = vmatprep.subr.mxu0 0.0
    %76 = vmatpush1.msra.mxu0 0.0
    %77 = vmatprep.subr.mxu0 0.0
    %78 = vmatpush1.msra.mxu0 0.0
    %79 = vmatprep.subr.mxu0 0.0
    %80 = vmatpush1.msra.mxu0 0.0
    %81 = vmatprep.subr.mxu0 0.0
    %82 = vmatpush1.msra.mxu0 0.0
    %83 = vmatprep.subr.mxu0 0.0
    %84 = vmatpush1.msra.mxu0 0.0
    %85 = vmatprep.subr.mxu0 0.0
    %86 = vmatpush1.msra.mxu0 0.0
    %87 = vmatprep.subr.mxu0 0.0
    %88 = vmatpush1.msra.mxu0 0.0
    %89 = vmatprep.subr.mxu0 0.0
    %90 = vmatpush1.msra.mxu0 0.0
    %91 = vmatprep.subr.mxu0 0.0
    %92 = vmatpush1.msra.mxu0 0.0
    %93 = vmatprep.subr.mxu0 0.0
    %94 = vmatpush1.msra.mxu0 0.0
    %95 = vmatprep.subr.mxu0 0.0
    %96 = vmatpush1.msra.mxu0 0.0
    %97 = vmatprep.subr.mxu0 0.0
    %98 = vmatpush1.msra.mxu0 0.0
    %99 = vmatprep.subr.mxu0 0.0
    %100 = vmatpush1.msra.mxu0 0.0
    %101 = vmatprep.subr.mxu0 0.0
    %102 = vmatpush1.msra.mxu0 0.0
    %103 = vmatprep.subr.mxu0 0.0
    %104 = vmatpush1.msra.mxu0 0.0
    %105 = vmatprep.subr.mxu0 0.0
    %106 = vmatpush1.msra.mxu0 0.0
    %107 = vmatprep.subr.mxu0 0.0
    %108 = vmatpush1.msra.mxu0 0.0
    %109 = vmatprep.subr.mxu0 0.0
    %110 = vmatpush1.msra.mxu0 0.0
    %111 = vmatprep.subr.mxu0 0.0
    %112 = vmatpush1.msra.mxu0 0.0
    %113 = vmatprep.subr.mxu0 0.0
    %114 = vmatpush1.msra.mxu0 0.0
    %115 = vmatprep.subr.mxu0 0.0
    %116 = vmatpush1.msra.mxu0 0.0
    %117 = vmatprep.subr.mxu0 0.0
    %118 = vmatpush1.msra.mxu0 0.0
    %119 = vmatprep.subr.mxu0 0.0
    %120 = vmatpush1.msra.mxu0 0.0
    %121 = vmatprep.mubr.f32.mxu0 0.0
    %122 = vmatmul.mubr.f32.gmra.mrb[0].mxu0 %v52
    %v123 = vpop.f32.mrb[0].mxu0
    %v124 = vadd.f32 %v49, %v123
    %v125 = vpop.f32.mrb[0].mxu0
    %126 = vmatprep.mubr.f32.mxu0 0.0
    %127 = vmatmul.mubr.f32.gmra.mrb[0].mxu0 %v55
    %v128 = vpop.f32.mrb[0].mxu0
    %v129 = vadd.f32 %v49, %v128
    %v130 = vpop.f32.mrb[0].mxu0
    %131 = vdwg.mxu0
    %v132 = vld [vmem:[%s3 + $0x31] sm:$0x1]
    %v133 = vlaneseq
    %v134 = vshrl.u32 %v133, 7
    %v135 = vsub.s32 0, %v134
    %v136 = vrot.slane %v132, %v135
    %vm137 = vcmask 261120
    %v139 = vsel %vm137, 0.0, 0
    %141 = vmatprep.subr.mxu0 0.0
    %142 = vmatpush1.msra.mxu0 %v39
    %143 = vmatprep.subr.mxu0 0.0
    %144 = vmatpush1.msra.mxu0 %v40
    %145 = vmatprep.subr.mxu0 0.0
    %146 = vmatpush1.msra.mxu0 %v41
    %147 = vmatprep.subr.mxu0 0.0
    %148 = vmatpush1.msra.mxu0 %v42
    %149 = vmatprep.subr.mxu0 0.0
    %150 = vmatpush1.msra.mxu0 0.0
    %151 = vmatprep.subr.mxu0 0.0
    %152 = vmatpush1.msra.mxu0 0.0
    %153 = vmatprep.subr.mxu0 0.0
    %154 = vmatpush1.msra.mxu0 0.0
    %155 = vmatprep.subr.mxu0 0.0
    %156 = vmatpush1.msra.mxu0 0.0
    %157 = vmatprep.subr.mxu0 0.0
    %158 = vmatpush1.msra.mxu0 0.0
    %159 = vmatprep.subr.mxu0 0.0
    %160 = vmatpush1.msra.mxu0 0.0
    %161 = vmatprep.subr.mxu0 0.0
    %162 = vmatpush1.msra.mxu0 0.0
    %163 = vmatprep.subr.mxu0 0.0
    %164 = vmatpush1.msra.mxu0 0.0
    %165 = vmatprep.subr.mxu0 0.0
    %166 = vmatpush1.msra.mxu0 0.0
    %167 = vmatprep.subr.mxu0 0.0
    %168 = vmatpush1.msra.mxu0 0.0
    %169 = vmatprep.subr.mxu0 0.0
    %170 = vmatpush1.msra.mxu0 0.0
    %171 = vmatprep.subr.mxu0 0.0
    %172 = vmatpush1.msra.mxu0 0.0
    %173 = vmatprep.subr.mxu0 0.0
    %174 = vmatpush1.msra.mxu0 0.0
    %175 = vmatprep.subr.mxu0 0.0
    %176 = vmatpush1.msra.mxu0 0.0
    %177 = vmatprep.subr.mxu0 0.0
    %178 = vmatpush1.msra.mxu0 0.0
    %179 = vmatprep.subr.mxu0 0.0
    %180 = vmatpush1.msra.mxu0 0.0
    %181 = vmatprep.subr.mxu0 0.0
    %182 = vmatpush1.msra.mxu0 0.0
    %183 = vmatprep.subr.mxu0 0.0
    %184 = vmatpush1.msra.mxu0 0.0
    %185 = vmatprep.subr.mxu0 0.0
    %186 = vmatpush1.msra.mxu0 0.0
    %187 = vmatprep.subr.mxu0 0.0
    %188 = vmatpush1.msra.mxu0 0.0
    %189 = vmatprep.subr.mxu0 0.0
    %190 = vmatpush1.msra.mxu0 0.0
    %191 = vmatprep.subr.mxu0 0.0
    %192 = vmatpush1.msra.mxu0 0.0
    %193 = vmatprep.subr.mxu0 0.0
    %194 = vmatpush1.msra.mxu0 0.0
    %195 = vmatprep.subr.mxu0 0.0
    %196 = vmatpush1.msra.mxu0 0.0
    %197 = vmatprep.subr.mxu0 0.0
    %198 = vmatpush1.msra.mxu0 0.0
    %199 = vmatprep.subr.mxu0 0.0
    %200 = vmatpush1.msra.mxu0 0.0
    %201 = vmatprep.subr.mxu0 0.0
    %202 = vmatpush1.msra.mxu0 0.0
    %203 = vmatprep.subr.mxu0 0.0
    %204 = vmatpush1.msra.mxu0 0.0
    %205 = vmatprep.mubr.f32.mxu0 0.0
    %206 = vmatmul.mubr.f32.gmra.mrb[0].mxu0 %v139
    %v207 = vpop.f32.mrb[0].mxu0
    %v208 = vadd.f32 0.0, %v207
    %v209 = vpop.f32.mrb[0].mxu0
    %210 = vdwg.mxu0
    %v211 = vadd.f32 %v124, %v208
    %v212 = vxor.u32 %v211, 2147483648
    %v213 = vmul.f32 %v212, 1.442695
    %v214 = vpow.pop %v213
    %v215 = vadd.f32 %v214, 1.0
    %v216 = vrcp.pop %v215
    %v217 = vmul.f32 1.0, %v216
    %v218 = vadd.f32 %v208, %v136
    %220 = vrot.lane.b32.xlu0 %v218, 64
    %v221 = vpop.permute.xlu0 %220
    %v223 = vmul.f32 %v217, %v221
    %225 = vrot.lane.b32.xlu0 %v223, 64
    %v226 = vpop.permute.xlu0 %225
    %v228 = vadd.f32 %v124, %v226
    %v229 = vtanh.pop %v228
    %v230 = vsub.f32 0.0, %v229
    %232 = vrot.lane.b32.xlu0 %v230, 96
    %v233 = vpop.permute.xlu0 %232
    %v235 = vmul.f32 %v217, %v233
    %237 = vrot.lane.b32.xlu0 %v235, 32
    %v238 = vpop.permute.xlu0 %237
    %v240 = vadd.f32 %v229, %v238
    %v241 = vadd.f32 %v240, 0.0
    %243 = vrot.lane.b32.xlu0 %v240, 64
    %v244 = vpop.permute.xlu0 %243
    %v245 = vsel %vm137, %v244, 0
    %247 = vmatprep.subr.mxu0 0.0
    %248 = vmatpush1.msra.mxu0 %v39
    %249 = vmatprep.subr.mxu0 0.0
    %250 = vmatpush1.msra.mxu0 %v40
    %251 = vmatprep.subr.mxu0 0.0
    %252 = vmatpush1.msra.mxu0 %v41
    %253 = vmatprep.subr.mxu0 0.0
    %254 = vmatpush1.msra.mxu0 %v42
    %255 = vmatprep.subr.mxu0 0.0
    %256 = vmatpush1.msra.mxu0 0.0
    %257 = vmatprep.subr.mxu0 0.0
    %258 = vmatpush1.msra.mxu0 0.0
    %259 = vmatprep.subr.mxu0 0.0
    %260 = vmatpush1.msra.mxu0 0.0
    %261 = vmatprep.subr.mxu0 0.0
    %262 = vmatpush1.msra.mxu0 0.0
    %263 = vmatprep.subr.mxu0 0.0
    %264 = vmatpush1.msra.mxu0 0.0
    %265 = vmatprep.subr.mxu0 0.0
    %266 = vmatpush1.msra.mxu0 0.0
    %267 = vmatprep.subr.mxu0 0.0
    %268 = vmatpush1.msra.mxu0 0.0
    %269 = vmatprep.subr.mxu0 0.0
    %270 = vmatpush1.msra.mxu0 0.0
    %271 = vmatprep.subr.mxu0 0.0
    %272 = vmatpush1.msra.mxu0 0.0
    %273 = vmatprep.subr.mxu0 0.0
    %274 = vmatpush1.msra.mxu0 0.0
    %275 = vmatprep.subr.mxu0 0.0
    %276 = vmatpush1.msra.mxu0 0.0
    %277 = vmatprep.subr.mxu0 0.0
    %278 = vmatpush1.msra.mxu0 0.0
    %279 = vmatprep.subr.mxu0 0.0
    %280 = vmatpush1.msra.mxu0 0.0
    %281 = vmatprep.subr.mxu0 0.0
    %282 = vmatpush1.msra.mxu0 0.0
    %283 = vmatprep.subr.mxu0 0.0
    %284 = vmatpush1.msra.mxu0 0.0
    %285 = vmatprep.subr.mxu0 0.0
    %286 = vmatpush1.msra.mxu0 0.0
    %287 = vmatprep.subr.mxu0 0.0
    %288 = vmatpush1.msra.mxu0 0.0
    %289 = vmatprep.subr.mxu0 0.0
    %290 = vmatpush1.msra.mxu0 0.0
    %291 = vmatprep.subr.mxu0 0.0
    %292 = vmatpush1.msra.mxu0 0.0
    %293 = vmatprep.subr.mxu0 0.0
    %294 = vmatpush1.msra.mxu0 0.0
    %295 = vmatprep.subr.mxu0 0.0
    %296 = vmatpush1.msra.mxu0 0.0
    %297 = vmatprep.subr.mxu0 0.0
    %298 = vmatpush1.msra.mxu0 0.0
    %299 = vmatprep.subr.mxu0 0.0
    %300 = vmatpush1.msra.mxu0 0.0
    %301 = vmatprep.subr.mxu0 0.0
    %302 = vmatpush1.msra.mxu0 0.0
    %303 = vmatprep.subr.mxu0 0.0
    %304 = vmatpush1.msra.mxu0 0.0
    %305 = vmatprep.subr.mxu0 0.0
    %306 = vmatpush1.msra.mxu0 0.0
    %307 = vmatprep.subr.mxu0 0.0
    %308 = vmatpush1.msra.mxu0 0.0
    %309 = vmatprep.subr.mxu0 0.0
    %310 = vmatpush1.msra.mxu0 0.0
    %311 = vmatprep.mubr.f32.mxu0 0.0
    %312 = vmatmul.mubr.f32.gmra.mrb[0].mxu0 %v245
    %v313 = vpop.f32.mrb[0].mxu0
    %v314 = vadd.f32 0.0, %v313
    %v315 = vpop.f32.mrb[0].mxu0
    %316 = vdwg.mxu0
    %v318 = vrot.slane %v314, 6
    %v320 = vadd.f32 %v124, %v318
    %v321 = vxor.u32 %v320, 2147483648
    %v322 = vmul.f32 %v321, 1.442695
    %v323 = vpow.pop %v322
    %v324 = vadd.f32 %v323, 1.0
    %v325 = vrcp.pop %v324
    %v326 = vmul.f32 1.0, %v325
    %v327 = vadd.f32 %v314, %v136
    %v329 = vrot.slane %v327, 6
    %330 = vrot.lane.b32.xlu0 %v329, 64
    %v331 = vpop.permute.xlu0 %330
    %v333 = vmul.f32 %v326, %v331
    %335 = vrot.lane.b32.xlu0 %v333, 64
    %v336 = vpop.permute.xlu0 %335
    %v338 = vadd.f32 %v124, %v336
    %v339 = vtanh.pop %v338
    %v341 = vrot.slane %v339, 2
    %v343 = vsub.f32 %v240, %v341
    %v345 = vrot.slane %v343, 6
    %346 = vrot.lane.b32.xlu0 %v345, 96
    %v347 = vpop.permute.xlu0 %346
    %v349 = vmul.f32 %v326, %v347
    %351 = vrot.lane.b32.xlu0 %v349, 32
    %v352 = vpop.permute.xlu0 %351
    %v354 = vadd.f32 %v339, %v352
    %v356 = vrot.slane %v354, 2
    %v358 = vadd.f32 %v241, %v356
    %359 = vrot.lane.b32.xlu0 %v356, 64
    %v360 = vpop.permute.xlu0 %359
    %v361 = vsel %vm137, %v360, 0
    %363 = vmatprep.subr.mxu0 0.0
    %364 = vmatpush1.msra.mxu0 %v39
    %365 = vmatprep.subr.mxu0 0.0
    %366 = vmatpush1.msra.mxu0 %v40
    %367 = vmatprep.subr.mxu0 0.0
    %368 = vmatpush1.msra.mxu0 %v41
    %369 = vmatprep.subr.mxu0 0.0
    %370 = vmatpush1.msra.mxu0 %v42
    %371 = vmatprep.subr.mxu0 0.0
    %372 = vmatpush1.msra.mxu0 0.0
    %373 = vmatprep.subr.mxu0 0.0
    %374 = vmatpush1.msra.mxu0 0.0
    %375 = vmatprep.subr.mxu0 0.0
    %376 = vmatpush1.msra.mxu0 0.0
    %377 = vmatprep.subr.mxu0 0.0
    %378 = vmatpush1.msra.mxu0 0.0
    %379 = vmatprep.subr.mxu0 0.0
    %380 = vmatpush1.msra.mxu0 0.0
    %381 = vmatprep.subr.mxu0 0.0
    %382 = vmatpush1.msra.mxu0 0.0
    %383 = vmatprep.subr.mxu0 0.0
    %384 = vmatpush1.msra.mxu0 0.0
    %385 = vmatprep.subr.mxu0 0.0
    %386 = vmatpush1.msra.mxu0 0.0
    %387 = vmatprep.subr.mxu0 0.0
    %388 = vmatpush1.msra.mxu0 0.0
    %389 = vmatprep.subr.mxu0 0.0
    %390 = vmatpush1.msra.mxu0 0.0
    %391 = vmatprep.subr.mxu0 0.0
    %392 = vmatpush1.msra.mxu0 0.0
    %393 = vmatprep.subr.mxu0 0.0
    %394 = vmatpush1.msra.mxu0 0.0
    %395 = vmatprep.subr.mxu0 0.0
    %396 = vmatpush1.msra.mxu0 0.0
    %397 = vmatprep.subr.mxu0 0.0
    %398 = vmatpush1.msra.mxu0 0.0
    %399 = vmatprep.subr.mxu0 0.0
    %400 = vmatpush1.msra.mxu0 0.0
    %401 = vmatprep.subr.mxu0 0.0
    %402 = vmatpush1.msra.mxu0 0.0
    %403 = vmatprep.subr.mxu0 0.0
    %404 = vmatpush1.msra.mxu0 0.0
    %405 = vmatprep.subr.mxu0 0.0
    %406 = vmatpush1.msra.mxu0 0.0
    %407 = vmatprep.subr.mxu0 0.0
    %408 = vmatpush1.msra.mxu0 0.0
    %409 = vmatprep.subr.mxu0 0.0
    %410 = vmatpush1.msra.mxu0 0.0
    %411 = vmatprep.subr.mxu0 0.0
    %412 = vmatpush1.msra.mxu0 0.0
    %413 = vmatprep.subr.mxu0 0.0
    %414 = vmatpush1.msra.mxu0 0.0
    %415 = vmatprep.subr.mxu0 0.0
    %416 = vmatpush1.msra.mxu0 0.0
    %417 = vmatprep.subr.mxu0 0.0
    %418 = vmatpush1.msra.mxu0 0.0
    %419 = vmatprep.subr.mxu0 0.0
    %420 = vmatpush1.msra.mxu0 0.0
    %421 = vmatprep.subr.mxu0 0.0
    %422 = vmatpush1.msra.mxu0 0.0
    %423 = vmatprep.subr.mxu0 0.0
    %424 = vmatpush1.msra.mxu0 0.0
    %425 = vmatprep.subr.mxu0 0.0
    %426 = vmatpush1.msra.mxu0 0.0
    %427 = vmatprep.mubr.f32.mxu0 0.0
    %428 = vmatmul.mubr.f32.gmra.mrb[0].mxu0 %v361
    %v429 = vpop.f32.mrb[0].mxu0
    %v430 = vadd.f32 0.0, %v429
    %v431 = vpop.f32.mrb[0].mxu0
    %432 = vdwg.mxu0
    %v434 = vrot.slane %v430, 4
    %v436 = vadd.f32 %v124, %v434
    %v437 = vxor.u32 %v436, 2147483648
    %v438 = vmul.f32 %v437, 1.442695
    %v439 = vpow.pop %v438
    %v440 = vadd.f32 %v439, 1.0
    %v441 = vrcp.pop %v440
    %v442 = vmul.f32 1.0, %v441
    %v443 = vadd.f32 %v430, %v136
    %v445 = vrot.slane %v443, 4
    %446 = vrot.lane.b32.xlu0 %v445, 64
    %v447 = vpop.permute.xlu0 %446
    %v449 = vmul.f32 %v442, %v447
    %451 = vrot.lane.b32.xlu0 %v449, 64
    %v452 = vpop.permute.xlu0 %451
    %v454 = vadd.f32 %v124, %v452
    %v455 = vtanh.pop %v454
    %v457 = vrot.slane %v455, 2
    %v459 = vsub.f32 %v354, %v457
    %v461 = vrot.slane %v459, 6
    %462 = vrot.lane.b32.xlu0 %v461, 96
    %v463 = vpop.permute.xlu0 %462
    %v465 = vmul.f32 %v442, %v463
    %467 = vrot.lane.b32.xlu0 %v465, 32
    %v468 = vpop.permute.xlu0 %467
    %v470 = vadd.f32 %v455, %v468
    %v472 = vrot.slane %v470, 4
    %v474 = vadd.f32 %v358, %v472
    %475 = vrot.lane.b32.xlu0 %v472, 64
    %v476 = vpop.permute.xlu0 %475
    %v477 = vsel %vm137, %v476, 0
    %479 = vmatprep.subr.mxu0 0.0
    %480 = vmatpush1.msra.mxu0 %v39
    %481 = vmatprep.subr.mxu0 0.0
    %482 = vmatpush1.msra.mxu0 %v40
    %483 = vmatprep.subr.mxu0 0.0
    %484 = vmatpush1.msra.mxu0 %v41
    %485 = vmatprep.subr.mxu0 0.0
    %486 = vmatpush1.msra.mxu0 %v42
    %487 = vmatprep.subr.mxu0 0.0
    %488 = vmatpush1.msra.mxu0 0.0
    %489 = vmatprep.subr.mxu0 0.0
    %490 = vmatpush1.msra.mxu0 0.0
    %491 = vmatprep.subr.mxu0 0.0
    %492 = vmatpush1.msra.mxu0 0.0
    %493 = vmatprep.subr.mxu0 0.0
    %494 = vmatpush1.msra.mxu0 0.0
    %495 = vmatprep.subr.mxu0 0.0
    %496 = vmatpush1.msra.mxu0 0.0
    %497 = vmatprep.subr.mxu0 0.0
    %498 = vmatpush1.msra.mxu0 0.0
    %499 = vmatprep.subr.mxu0 0.0
    %500 = vmatpush1.msra.mxu0 0.0
    %501 = vmatprep.subr.mxu0 0.0
    %502 = vmatpush1.msra.mxu0 0.0
    %503 = vmatprep.subr.mxu0 0.0
    %504 = vmatpush1.msra.mxu0 0.0
    %505 = vmatprep.subr.mxu0 0.0
    %506 = vmatpush1.msra.mxu0 0.0
    %507 = vmatprep.subr.mxu0 0.0
    %508 = vmatpush1.msra.mxu0 0.0
    %509 = vmatprep.subr.mxu0 0.0
    %510 = vmatpush1.msra.mxu0 0.0
    %511 = vmatprep.subr.mxu0 0.0
    %512 = vmatpush1.msra.mxu0 0.0
    %513 = vmatprep.subr.mxu0 0.0
    %514 = vmatpush1.msra.mxu0 0.0
    %515 = vmatprep.subr.mxu0 0.0
    %516 = vmatpush1.msra.mxu0 0.0
    %517 = vmatprep.subr.mxu0 0.0
    %518 = vmatpush1.msra.mxu0 0.0
    %519 = vmatprep.subr.mxu0 0.0
    %520 = vmatpush1.msra.mxu0 0.0
    %521 = vmatprep.subr.mxu0 0.0
    %522 = vmatpush1.msra.mxu0 0.0
    %523 = vmatprep.subr.mxu0 0.0
    %524 = vmatpush1.msra.mxu0 0.0
    %525 = vmatprep.subr.mxu0 0.0
    %526 = vmatpush1.msra.mxu0 0.0
    %527 = vmatprep.subr.mxu0 0.0
    %528 = vmatpush1.msra.mxu0 0.0
    %529 = vmatprep.subr.mxu0 0.0
    %530 = vmatpush1.msra.mxu0 0.0
    %531 = vmatprep.subr.mxu0 0.0
    %532 = vmatpush1.msra.mxu0 0.0
    %533 = vmatprep.subr.mxu0 0.0
    %534 = vmatpush1.msra.mxu0 0.0
    %535 = vmatprep.subr.mxu0 0.0
    %536 = vmatpush1.msra.mxu0 0.0
    %537 = vmatprep.subr.mxu0 0.0
    %538 = vmatpush1.msra.mxu0 0.0
    %539 = vmatprep.subr.mxu0 0.0
    %540 = vmatpush1.msra.mxu0 0.0
    %541 = vmatprep.subr.mxu0 0.0
    %542 = vmatpush1.msra.mxu0 0.0
    %543 = vmatprep.mubr.f32.mxu0 0.0
    %544 = vmatmul.mubr.f32.gmra.mrb[0].mxu0 %v477
    %v545 = vpop.f32.mrb[0].mxu0
    %v546 = vadd.f32 0.0, %v545
    %v547 = vpop.f32.mrb[0].mxu0
    %548 = vdwg.mxu0
    %v550 = vrot.slane %v546, 2
    %v552 = vadd.f32 %v124, %v550
    %v553 = vxor.u32 %v552, 2147483648
    %v554 = vmul.f32 %v553, 1.442695
    %v555 = vpow.pop %v554
    %v556 = vadd.f32 %v555, 1.0
    %v557 = vrcp.pop %v556
    %v558 = vmul.f32 1.0, %v557
    %v559 = vadd.f32 %v546, %v136
    %v561 = vrot.slane %v559, 2
    %562 = vrot.lane.b32.xlu0 %v561, 64
    %v563 = vpop.permute.xlu0 %562
    %v565 = vmul.f32 %v558, %v563
    %567 = vrot.lane.b32.xlu0 %v565, 64
    %v568 = vpop.permute.xlu0 %567
    %v570 = vadd.f32 %v124, %v568
    %v571 = vtanh.pop %v570
    %v573 = vrot.slane %v571, 2
    %v575 = vsub.f32 %v470, %v573
    %v577 = vrot.slane %v575, 6
    %578 = vrot.lane.b32.xlu0 %v577, 96
    %v579 = vpop.permute.xlu0 %578
    %v581 = vmul.f32 %v558, %v579
    %583 = vrot.lane.b32.xlu0 %v581, 32
    %v584 = vpop.permute.xlu0 %583
    %v586 = vadd.f32 %v571, %v584
    %v588 = vrot.slane %v586, 6
    %v590 = vadd.f32 %v474, %v588
    %591 = vrot.lane.b32.xlu0 %v588, 64
    %v592 = vpop.permute.xlu0 %591
    %v593 = vsel %vm137, %v592, 0
    %595 = vmatprep.subr.mxu0 0.0
    %596 = vmatpush1.msra.mxu0 %v39
    %597 = vmatprep.subr.mxu0 0.0
    %598 = vmatpush1.msra.mxu0 %v40
    %599 = vmatprep.subr.mxu0 0.0
    %600 = vmatpush1.msra.mxu0 %v41
    %601 = vmatprep.subr.mxu0 0.0
    %602 = vmatpush1.msra.mxu0 %v42
    %603 = vmatprep.subr.mxu0 0.0
    %604 = vmatpush1.msra.mxu0 0.0
    %605 = vmatprep.subr.mxu0 0.0
    %606 = vmatpush1.msra.mxu0 0.0
    %607 = vmatprep.subr.mxu0 0.0
    %608 = vmatpush1.msra.mxu0 0.0
    %609 = vmatprep.subr.mxu0 0.0
    %610 = vmatpush1.msra.mxu0 0.0
    %611 = vmatprep.subr.mxu0 0.0
    %612 = vmatpush1.msra.mxu0 0.0
    %613 = vmatprep.subr.mxu0 0.0
    %614 = vmatpush1.msra.mxu0 0.0
    %615 = vmatprep.subr.mxu0 0.0
    %616 = vmatpush1.msra.mxu0 0.0
    %617 = vmatprep.subr.mxu0 0.0
    %618 = vmatpush1.msra.mxu0 0.0
    %619 = vmatprep.subr.mxu0 0.0
    %620 = vmatpush1.msra.mxu0 0.0
    %621 = vmatprep.subr.mxu0 0.0
    %622 = vmatpush1.msra.mxu0 0.0
    %623 = vmatprep.subr.mxu0 0.0
    %624 = vmatpush1.msra.mxu0 0.0
    %625 = vmatprep.subr.mxu0 0.0
    %626 = vmatpush1.msra.mxu0 0.0
    %627 = vmatprep.subr.mxu0 0.0
    %628 = vmatpush1.msra.mxu0 0.0
    %629 = vmatprep.subr.mxu0 0.0
    %630 = vmatpush1.msra.mxu0 0.0
    %631 = vmatprep.subr.mxu0 0.0
    %632 = vmatpush1.msra.mxu0 0.0
    %633 = vmatprep.subr.mxu0 0.0
    %634 = vmatpush1.msra.mxu0 0.0
    %635 = vmatprep.subr.mxu0 0.0
    %636 = vmatpush1.msra.mxu0 0.0
    %637 = vmatprep.subr.mxu0 0.0
    %638 = vmatpush1.msra.mxu0 0.0
    %639 = vmatprep.subr.mxu0 0.0
    %640 = vmatpush1.msra.mxu0 0.0
    %641 = vmatprep.subr.mxu0 0.0
    %642 = vmatpush1.msra.mxu0 0.0
    %643 = vmatprep.subr.mxu0 0.0
    %644 = vmatpush1.msra.mxu0 0.0
    %645 = vmatprep.subr.mxu0 0.0
    %646 = vmatpush1.msra.mxu0 0.0
    %647 = vmatprep.subr.mxu0 0.0
    %648 = vmatpush1.msra.mxu0 0.0
    %649 = vmatprep.subr.mxu0 0.0
    %650 = vmatpush1.msra.mxu0 0.0
    %651 = vmatprep.subr.mxu0 0.0
    %652 = vmatpush1.msra.mxu0 0.0
    %653 = vmatprep.subr.mxu0 0.0
    %654 = vmatpush1.msra.mxu0 0.0
    %655 = vmatprep.subr.mxu0 0.0
    %656 = vmatpush1.msra.mxu0 0.0
    %657 = vmatprep.subr.mxu0 0.0
    %658 = vmatpush1.msra.mxu0 0.0
    %659 = vmatprep.mubr.f32.mxu0 0.0
    %660 = vmatmul.mubr.f32.gmra.mrb[0].mxu0 %v593
    %v661 = vpop.f32.mrb[0].mxu0
    %v662 = vadd.f32 0.0, %v661
    %v663 = vpop.f32.mrb[0].mxu0
    %664 = vdwg.mxu0
    %v665 = vadd.f32 %v129, %v662
    %v666 = vxor.u32 %v665, 2147483648
    %v667 = vmul.f32 %v666, 1.442695
    %v668 = vpow.pop %v667
    %v669 = vadd.f32 %v668, 1.0
    %v670 = vrcp.pop %v669
    %v671 = vmul.f32 1.0, %v670
    %v672 = vadd.f32 %v662, %v136
    %674 = vrot.lane.b32.xlu0 %v672, 64
    %v675 = vpop.permute.xlu0 %674
    %v677 = vmul.f32 %v671, %v675
    %679 = vrot.lane.b32.xlu0 %v677, 64
    %v680 = vpop.permute.xlu0 %679
    %v682 = vadd.f32 %v129, %v680
    %v683 = vtanh.pop %v682
    %v685 = vrot.slane %v683, 2
    %v687 = vsub.f32 %v586, %v685
    %v689 = vrot.slane %v687, 6
    %690 = vrot.lane.b32.xlu0 %v689, 96
    %v691 = vpop.permute.xlu0 %690
    %v693 = vmul.f32 %v671, %v691
    %695 = vrot.lane.b32.xlu0 %v693, 32
    %v696 = vpop.permute.xlu0 %695
    %v698 = vadd.f32 %v683, %v696
    %v699 = vadd.f32 %v590, %v698
    %701 = vrot.lane.b32.xlu0 %v698, 64
    %v702 = vpop.permute.xlu0 %701
    %v703 = vsel %vm137, %v702, 0
    %705 = vmatprep.subr.mxu0 0.0
    %706 = vmatpush1.msra.mxu0 %v39
    %707 = vmatprep.subr.mxu0 0.0
    %708 = vmatpush1.msra.mxu0 %v40
    %709 = vmatprep.subr.mxu0 0.0
    %710 = vmatpush1.msra.mxu0 %v41
    %711 = vmatprep.subr.mxu0 0.0
    %712 = vmatpush1.msra.mxu0 %v42
    %713 = vmatprep.subr.mxu0 0.0
    %714 = vmatpush1.msra.mxu0 0.0
    %715 = vmatprep.subr.mxu0 0.0
    %716 = vmatpush1.msra.mxu0 0.0
    %717 = vmatprep.subr.mxu0 0.0
    %718 = vmatpush1.msra.mxu0 0.0
    %719 = vmatprep.subr.mxu0 0.0
    %720 = vmatpush1.msra.mxu0 0.0
    %721 = vmatprep.subr.mxu0 0.0
    %722 = vmatpush1.msra.mxu0 0.0
    %723 = vmatprep.subr.mxu0 0.0
    %724 = vmatpush1.msra.mxu0 0.0
    %725 = vmatprep.subr.mxu0 0.0
    %726 = vmatpush1.msra.mxu0 0.0
    %727 = vmatprep.subr.mxu0 0.0
    %728 = vmatpush1.msra.mxu0 0.0
    %729 = vmatprep.subr.mxu0 0.0
    %730 = vmatpush1.msra.mxu0 0.0
    %731 = vmatprep.subr.mxu0 0.0
    %732 = vmatpush1.msra.mxu0 0.0
    %733 = vmatprep.subr.mxu0 0.0
    %734 = vmatpush1.msra.mxu0 0.0
    %735 = vmatprep.subr.mxu0 0.0
    %736 = vmatpush1.msra.mxu0 0.0
    %737 = vmatprep.subr.mxu0 0.0
    %738 = vmatpush1.msra.mxu0 0.0
    %739 = vmatprep.subr.mxu0 0.0
    %740 = vmatpush1.msra.mxu0 0.0
    %741 = vmatprep.subr.mxu0 0.0
    %742 = vmatpush1.msra.mxu0 0.0
    %743 = vmatprep.subr.mxu0 0.0
    %744 = vmatpush1.msra.mxu0 0.0
    %745 = vmatprep.subr.mxu0 0.0
    %746 = vmatpush1.msra.mxu0 0.0
    %747 = vmatprep.subr.mxu0 0.0
    %748 = vmatpush1.msra.mxu0 0.0
    %749 = vmatprep.subr.mxu0 0.0
    %750 = vmatpush1.msra.mxu0 0.0
    %751 = vmatprep.subr.mxu0 0.0
    %752 = vmatpush1.msra.mxu0 0.0
    %753 = vmatprep.subr.mxu0 0.0
    %754 = vmatpush1.msra.mxu0 0.0
    %755 = vmatprep.subr.mxu0 0.0
    %756 = vmatpush1.msra.mxu0 0.0
    %757 = vmatprep.subr.mxu0 0.0
    %758 = vmatpush1.msra.mxu0 0.0
    %759 = vmatprep.subr.mxu0 0.0
    %760 = vmatpush1.msra.mxu0 0.0
    %761 = vmatprep.subr.mxu0 0.0
    %762 = vmatpush1.msra.mxu0 0.0
    %763 = vmatprep.subr.mxu0 0.0
    %764 = vmatpush1.msra.mxu0 0.0
    %765 = vmatprep.subr.mxu0 0.0
    %766 = vmatpush1.msra.mxu0 0.0
    %767 = vmatprep.subr.mxu0 0.0
    %768 = vmatpush1.msra.mxu0 0.0
    %769 = vmatprep.mubr.f32.mxu0 0.0
    %770 = vmatmul.mubr.f32.gmra.mrb[0].mxu0 %v703
    %v771 = vpop.f32.mrb[0].mxu0
    %v772 = vadd.f32 0.0, %v771
    %v773 = vpop.f32.mrb[0].mxu0
    %774 = vdwg.mxu0
    %v776 = vrot.slane %v772, 6
    %v778 = vadd.f32 %v129, %v776
    %v779 = vxor.u32 %v778, 2147483648
    %v780 = vmul.f32 %v779, 1.442695
    %v781 = vpow.pop %v780
    %v782 = vadd.f32 %v781, 1.0
    %v783 = vrcp.pop %v782
    %v784 = vmul.f32 1.0, %v783
    %v785 = vadd.f32 %v772, %v136
    %v787 = vrot.slane %v785, 6
    %788 = vrot.lane.b32.xlu0 %v787, 64
    %v789 = vpop.permute.xlu0 %788
    %v791 = vmul.f32 %v784, %v789
    %793 = vrot.lane.b32.xlu0 %v791, 64
    %v794 = vpop.permute.xlu0 %793
    %v796 = vadd.f32 %v129, %v794
    %v797 = vtanh.pop %v796
    %v799 = vrot.slane %v797, 2
    %v801 = vsub.f32 %v698, %v799
    %v803 = vrot.slane %v801, 6
    %804 = vrot.lane.b32.xlu0 %v803, 96
    %v805 = vpop.permute.xlu0 %804
    %v807 = vmul.f32 %v784, %v805
    %809 = vrot.lane.b32.xlu0 %v807, 32
    %v810 = vpop.permute.xlu0 %809
    %v812 = vadd.f32 %v797, %v810
    %v814 = vrot.slane %v812, 2
    %v816 = vadd.f32 %v699, %v814
    %817 = vrot.lane.b32.xlu0 %v814, 64
    %v818 = vpop.permute.xlu0 %817
    %v819 = vsel %vm137, %v818, 0
    %821 = vmatprep.subr.mxu0 0.0
    %822 = vmatpush1.msra.mxu0 %v39
    %823 = vmatprep.subr.mxu0 0.0
    %824 = vmatpush1.msra.mxu0 %v40
    %825 = vmatprep.subr.mxu0 0.0
    %826 = vmatpush1.msra.mxu0 %v41
    %827 = vmatprep.subr.mxu0 0.0
    %828 = vmatpush1.msra.mxu0 %v42
    %829 = vmatprep.subr.mxu0 0.0
    %830 = vmatpush1.msra.mxu0 0.0
    %831 = vmatprep.subr.mxu0 0.0
    %832 = vmatpush1.msra.mxu0 0.0
    %833 = vmatprep.subr.mxu0 0.0
    %834 = vmatpush1.msra.mxu0 0.0
    %835 = vmatprep.subr.mxu0 0.0
    %836 = vmatpush1.msra.mxu0 0.0
    %837 = vmatprep.subr.mxu0 0.0
    %838 = vmatpush1.msra.mxu0 0.0
    %839 = vmatprep.subr.mxu0 0.0
    %840 = vmatpush1.msra.mxu0 0.0
    %841 = vmatprep.subr.mxu0 0.0
    %842 = vmatpush1.msra.mxu0 0.0
    %843 = vmatprep.subr.mxu0 0.0
    %844 = vmatpush1.msra.mxu0 0.0
    %845 = vmatprep.subr.mxu0 0.0
    %846 = vmatpush1.msra.mxu0 0.0
    %847 = vmatprep.subr.mxu0 0.0
    %848 = vmatpush1.msra.mxu0 0.0
    %849 = vmatprep.subr.mxu0 0.0
    %850 = vmatpush1.msra.mxu0 0.0
    %851 = vmatprep.subr.mxu0 0.0
    %852 = vmatpush1.msra.mxu0 0.0
    %853 = vmatprep.subr.mxu0 0.0
    %854 = vmatpush1.msra.mxu0 0.0
    %855 = vmatprep.subr.mxu0 0.0
    %856 = vmatpush1.msra.mxu0 0.0
    %857 = vmatprep.subr.mxu0 0.0
    %858 = vmatpush1.msra.mxu0 0.0
    %859 = vmatprep.subr.mxu0 0.0
    %860 = vmatpush1.msra.mxu0 0.0
    %861 = vmatprep.subr.mxu0 0.0
    %862 = vmatpush1.msra.mxu0 0.0
    %863 = vmatprep.subr.mxu0 0.0
    %864 = vmatpush1.msra.mxu0 0.0
    %865 = vmatprep.subr.mxu0 0.0
    %866 = vmatpush1.msra.mxu0 0.0
    %867 = vmatprep.subr.mxu0 0.0
    %868 = vmatpush1.msra.mxu0 0.0
    %869 = vmatprep.subr.mxu0 0.0
    %870 = vmatpush1.msra.mxu0 0.0
    %871 = vmatprep.subr.mxu0 0.0
    %872 = vmatpush1.msra.mxu0 0.0
    %873 = vmatprep.subr.mxu0 0.0
    %874 = vmatpush1.msra.mxu0 0.0
    %875 = vmatprep.subr.mxu0 0.0
    %876 = vmatpush1.msra.mxu0 0.0
    %877 = vmatprep.subr.mxu0 0.0
    %878 = vmatpush1.msra.mxu0 0.0
    %879 = vmatprep.subr.mxu0 0.0
    %880 = vmatpush1.msra.mxu0 0.0
    %881 = vmatprep.subr.mxu0 0.0
    %882 = vmatpush1.msra.mxu0 0.0
    %883 = vmatprep.subr.mxu0 0.0
    %884 = vmatpush1.msra.mxu0 0.0
    %885 = vmatprep.mubr.f32.mxu0 0.0
    %886 = vmatmul.mubr.f32.gmra.mrb[0].mxu0 %v819
    %v887 = vpop.f32.mrb[0].mxu0
    %v888 = vadd.f32 0.0, %v887
    %v889 = vpop.f32.mrb[0].mxu0
    %890 = vdwg.mxu0
    %v892 = vrot.slane %v888, 4
    %v894 = vadd.f32 %v129, %v892
    %v895 = vxor.u32 %v894, 2147483648
    %v896 = vmul.f32 %v895, 1.442695
    %v897 = vpow.pop %v896
    %v898 = vadd.f32 %v897, 1.0
    %v899 = vrcp.pop %v898
    %v900 = vmul.f32 1.0, %v899
    %v901 = vadd.f32 %v888, %v136
    %v903 = vrot.slane %v901, 4
    %904 = vrot.lane.b32.xlu0 %v903, 64
    %v905 = vpop.permute.xlu0 %904
    %v907 = vmul.f32 %v900, %v905
    %909 = vrot.lane.b32.xlu0 %v907, 64
    %v910 = vpop.permute.xlu0 %909
    %v912 = vadd.f32 %v129, %v910
    %v913 = vtanh.pop %v912
    %v915 = vrot.slane %v913, 2
    %v917 = vsub.f32 %v812, %v915
    %v919 = vrot.slane %v917, 6
    %920 = vrot.lane.b32.xlu0 %v919, 96
    %v921 = vpop.permute.xlu0 %920
    %v923 = vmul.f32 %v900, %v921
    %925 = vrot.lane.b32.xlu0 %v923, 32
    %v926 = vpop.permute.xlu0 %925
    %v928 = vadd.f32 %v913, %v926
    %v930 = vrot.slane %v928, 4
    %v932 = vadd.f32 %v816, %v930
    %933 = vrot.lane.b32.xlu0 %v930, 64
    %v934 = vpop.permute.xlu0 %933
    %v935 = vsel %vm137, %v934, 0
    %937 = vmatprep.subr.mxu0 0.0
    %938 = vmatpush1.msra.mxu0 %v39
    %939 = vmatprep.subr.mxu0 0.0
    %940 = vmatpush1.msra.mxu0 %v40
    %941 = vmatprep.subr.mxu0 0.0
    %942 = vmatpush1.msra.mxu0 %v41
    %943 = vmatprep.subr.mxu0 0.0
    %944 = vmatpush1.msra.mxu0 %v42
    %945 = vmatprep.subr.mxu0 0.0
    %946 = vmatpush1.msra.mxu0 0.0
    %947 = vmatprep.subr.mxu0 0.0
    %948 = vmatpush1.msra.mxu0 0.0
    %949 = vmatprep.subr.mxu0 0.0
    %950 = vmatpush1.msra.mxu0 0.0
    %951 = vmatprep.subr.mxu0 0.0
    %952 = vmatpush1.msra.mxu0 0.0
    %953 = vmatprep.subr.mxu0 0.0
    %954 = vmatpush1.msra.mxu0 0.0
    %955 = vmatprep.subr.mxu0 0.0
    %956 = vmatpush1.msra.mxu0 0.0
    %957 = vmatprep.subr.mxu0 0.0
    %958 = vmatpush1.msra.mxu0 0.0
    %959 = vmatprep.subr.mxu0 0.0
    %960 = vmatpush1.msra.mxu0 0.0
    %961 = vmatprep.subr.mxu0 0.0
    %962 = vmatpush1.msra.mxu0 0.0
    %963 = vmatprep.subr.mxu0 0.0
    %964 = vmatpush1.msra.mxu0 0.0
    %965 = vmatprep.subr.mxu0 0.0
    %966 = vmatpush1.msra.mxu0 0.0
    %967 = vmatprep.subr.mxu0 0.0
    %968 = vmatpush1.msra.mxu0 0.0
    %969 = vmatprep.subr.mxu0 0.0
    %970 = vmatpush1.msra.mxu0 0.0
    %971 = vmatprep.subr.mxu0 0.0
    %972 = vmatpush1.msra.mxu0 0.0
    %973 = vmatprep.subr.mxu0 0.0
    %974 = vmatpush1.msra.mxu0 0.0
    %975 = vmatprep.subr.mxu0 0.0
    %976 = vmatpush1.msra.mxu0 0.0
    %977 = vmatprep.subr.mxu0 0.0
    %978 = vmatpush1.msra.mxu0 0.0
    %979 = vmatprep.subr.mxu0 0.0
    %980 = vmatpush1.msra.mxu0 0.0
    %981 = vmatprep.subr.mxu0 0.0
    %982 = vmatpush1.msra.mxu0 0.0
    %983 = vmatprep.subr.mxu0 0.0
    %984 = vmatpush1.msra.mxu0 0.0
    %985 = vmatprep.subr.mxu0 0.0
    %986 = vmatpush1.msra.mxu0 0.0
    %987 = vmatprep.subr.mxu0 0.0
    %988 = vmatpush1.msra.mxu0 0.0
    %989 = vmatprep.subr.mxu0 0.0
    %990 = vmatpush1.msra.mxu0 0.0
    %991 = vmatprep.subr.mxu0 0.0
    %992 = vmatpush1.msra.mxu0 0.0
    %993 = vmatprep.subr.mxu0 0.0
    %994 = vmatpush1.msra.mxu0 0.0
    %995 = vmatprep.subr.mxu0 0.0
    %996 = vmatpush1.msra.mxu0 0.0
    %997 = vmatprep.subr.mxu0 0.0
    %998 = vmatpush1.msra.mxu0 0.0
    %999 = vmatprep.subr.mxu0 0.0
    %1000 = vmatpush1.msra.mxu0 0.0
    %1001 = vmatprep.mubr.f32.mxu0 0.0
    %1002 = vmatmul.mubr.f32.gmra.mrb[0].mxu0 %v935
    %v1003 = vpop.f32.mrb[0].mxu0
    %v1004 = vadd.f32 0.0, %v1003
    %v1005 = vpop.f32.mrb[0].mxu0
    %1006 = vdwg.mxu0
    %v1008 = vrot.slane %v1004, 2
    %v1010 = vadd.f32 %v129, %v1008
    %v1011 = vxor.u32 %v1010, 2147483648
    %v1012 = vmul.f32 %v1011, 1.442695
    %v1013 = vpow.pop %v1012
    %v1014 = vadd.f32 %v1013, 1.0
    %v1015 = vrcp.pop %v1014
    %v1016 = vmul.f32 1.0, %v1015
    %v1017 = vadd.f32 %v1004, %v136
    %v1019 = vrot.slane %v1017, 2
    %1020 = vrot.lane.b32.xlu0 %v1019, 64
    %v1021 = vpop.permute.xlu0 %1020
    %v1023 = vmul.f32 %v1016, %v1021
    %1025 = vrot.lane.b32.xlu0 %v1023, 64
    %v1026 = vpop.permute.xlu0 %1025
    %v1028 = vadd.f32 %v129, %v1026
    %v1029 = vtanh.pop %v1028
    %v1031 = vrot.slane %v1029, 2
    %v1033 = vsub.f32 %v928, %v1031
    %v1035 = vrot.slane %v1033, 6
    %1036 = vrot.lane.b32.xlu0 %v1035, 96
    %v1037 = vpop.permute.xlu0 %1036
    %v1039 = vmul.f32 %v1016, %v1037
    %1041 = vrot.lane.b32.xlu0 %v1039, 32
    %v1042 = vpop.permute.xlu0 %1041
    %v1044 = vadd.f32 %v1029, %v1042
    %v1046 = vrot.slane %v1044, 6
    %v1048 = vadd.f32 %v932, %v1046
    %v1049 = vmul.f32 %v1048, 0.125
    %s1050 = sld [smem:[#allocation3]]
    %s1051 = scalar_lea.vmem %s4, %s1050
    %v1052 = vld [vmem:[%s1051] sm:$0x1]
    %vm1053 = vcmask 188416
    %1054 = vst.msk [vmem:[#allocation2] sm:$0x1] %vm1053, %v1052
    %s1055 = sld [smem:[#allocation3 + $0x1]]
    %s1056 = sadd.s32 %s1055, 10
    %s1057 = scalar_lea.vmem %s4, %s1056
    %v1058 = vld [vmem:[%s1057] sm:$0x1]
    %1060 = vrot.lane.b32.xlu0 %v1058, 24
    %v1061 = vpop.permute.xlu0 %1060
    %vm1063 = vcmask 254144
    %1064 = vst.msk [vmem:[#allocation2] sm:$0x1] %vm1063, %v1061
    %s1065 = sld [smem:[#allocation3 + $0x2]]
    %s1066 = sadd.s32 %s1065, 15
    %s1067 = scalar_lea.vmem %s4, %s1066
    %v1068 = vld [vmem:[%s1067] sm:$0x1]
    %1070 = vrot.lane.b32.xlu0 %v1068, 32
    %v1071 = vpop.permute.xlu0 %1070
    %vm1073 = vcmask 319744
    %1074 = vst.msk [vmem:[#allocation2] sm:$0x1] %vm1073, %v1071
    %s1075 = sld [smem:[#allocation3 + $0x3]]
    %s1076 = sadd.s32 %s1075, 22
    %s1077 = scalar_lea.vmem %s4, %s1076
    %v1078 = vld [vmem:[%s1077] sm:$0x1]
    %1080 = vrot.lane.b32.xlu0 %v1078, 40
    %v1081 = vpop.permute.xlu0 %1080
    %vm1083 = vcmask 385344
    %1084 = vst.msk [vmem:[#allocation2] sm:$0x1] %vm1083, %v1081
    %s1085 = sld [smem:[#allocation3 + $0x80]]
    %s1086 = scalar_lea.vmem %s4, %s1085
    %v1087 = vld [vmem:[%s1086] sm:$0x1]
    %1088 = vst.msk [vmem:[#allocation2 + $0x1] sm:$0x1] %vm1053, %v1087
    %s1089 = sld [smem:[#allocation3 + $0x81]]
    %s1090 = sadd.s32 %s1089, 10
    %s1091 = scalar_lea.vmem %s4, %s1090
    %v1092 = vld [vmem:[%s1091] sm:$0x1]
    %1094 = vrot.lane.b32.xlu0 %v1092, 24
    %v1095 = vpop.permute.xlu0 %1094
    %1097 = vst.msk [vmem:[#allocation2 + $0x1] sm:$0x1] %vm1063, %v1095
    %s1098 = sld [smem:[#allocation3 + $0x82]]
    %s1099 = sadd.s32 %s1098, 15
    %s1100 = scalar_lea.vmem %s4, %s1099
    %v1101 = vld [vmem:[%s1100] sm:$0x1]
    %1103 = vrot.lane.b32.xlu0 %v1101, 32
    %v1104 = vpop.permute.xlu0 %1103
    %1106 = vst.msk [vmem:[#allocation2 + $0x1] sm:$0x1] %vm1073, %v1104
    %s1107 = sld [smem:[#allocation3 + $0x83]]
    %s1108 = sadd.s32 %s1107, 22
    %s1109 = scalar_lea.vmem %s4, %s1108
    %v1110 = vld [vmem:[%s1109] sm:$0x1]
    %1112 = vrot.lane.b32.xlu0 %v1110, 40
    %v1113 = vpop.permute.xlu0 %1112
    %1115 = vst.msk [vmem:[#allocation2 + $0x1] sm:$0x1] %vm1083, %v1113
    %v1116 = vld [vmem:[#allocation2] sm:$0x3]
    %v1117 = vld [vmem:[%s5] sm:$0xff]
    %v1118 = vld [vmem:[%s5 + $0x8] sm:$0xff]
    %v1119 = vld [vmem:[%s5 + $0x10] sm:$0xff]
    %v1120 = vld [vmem:[%s5 + $0x18] sm:$0xff]
    %v1121 = vld [vmem:[%s5 + $0x20] sm:$0xff]
    %v1122 = vld [vmem:[%s5 + $0x28] sm:$0xff]
    %v1123 = vld [vmem:[%s5 + $0x3c] sm:$0x1]
    %v1124 = vlaneseq
    %v1125 = vshrl.u32 %v1124, 7
    %v1126 = vsub.s32 0, %v1125
    %v1127 = vrot.slane %v1123, %v1126
    %vm1128 = vcmask 392192
    %v1130 = vsel %vm1128, %v1116, 0
    %1132 = vmatprep.subr.mxu0 0.0
    %1133 = vmatpush1.msra.mxu0 %v1117
    %1134 = vmatprep.subr.mxu0 0.0
    %1135 = vmatpush1.msra.mxu0 %v1118
    %1136 = vmatprep.subr.mxu0 0.0
    %1137 = vmatpush1.msra.mxu0 %v1119
    %1138 = vmatprep.subr.mxu0 0.0
    %1139 = vmatpush1.msra.mxu0 %v1120
    %1140 = vmatprep.subr.mxu0 0.0
    %1141 = vmatpush1.msra.mxu0 %v1121
    %1142 = vmatprep.subr.mxu0 0.0
    %1143 = vmatpush1.msra.mxu0 %v1122
    %1144 = vmatprep.subr.mxu0 0.0
    %1145 = vmatpush1.msra.mxu0 0.0
    %1146 = vmatprep.subr.mxu0 0.0
    %1147 = vmatpush1.msra.mxu0 0.0
    %1148 = vmatprep.subr.mxu0 0.0
    %1149 = vmatpush1.msra.mxu0 0.0
    %1150 = vmatprep.subr.mxu0 0.0
    %1151 = vmatpush1.msra.mxu0 0.0
    %1152 = vmatprep.subr.mxu0 0.0
    %1153 = vmatpush1.msra.mxu0 0.0
    %1154 = vmatprep.subr.mxu0 0.0
    %1155 = vmatpush1.msra.mxu0 0.0
    %1156 = vmatprep.subr.mxu0 0.0
    %1157 = vmatpush1.msra.mxu0 0.0
    %1158 = vmatprep.subr.mxu0 0.0
    %1159 = vmatpush1.msra.mxu0 0.0
    %1160 = vmatprep.subr.mxu0 0.0
    %1161 = vmatpush1.msra.mxu0 0.0
    %1162 = vmatprep.subr.mxu0 0.0
    %1163 = vmatpush1.msra.mxu0 0.0
    %1164 = vmatprep.subr.mxu0 0.0
    %1165 = vmatpush1.msra.mxu0 0.0
    %1166 = vmatprep.subr.mxu0 0.0
    %1167 = vmatpush1.msra.mxu0 0.0
    %1168 = vmatprep.subr.mxu0 0.0
    %1169 = vmatpush1.msra.mxu0 0.0
    %1170 = vmatprep.subr.mxu0 0.0
    %1171 = vmatpush1.msra.mxu0 0.0
    %1172 = vmatprep.subr.mxu0 0.0
    %1173 = vmatpush1.msra.mxu0 0.0
    %1174 = vmatprep.subr.mxu0 0.0
    %1175 = vmatpush1.msra.mxu0 0.0
    %1176 = vmatprep.subr.mxu0 0.0
    %1177 = vmatpush1.msra.mxu0 0.0
    %1178 = vmatprep.subr.mxu0 0.0
    %1179 = vmatpush1.msra.mxu0 0.0
    %1180 = vmatprep.subr.mxu0 0.0
    %1181 = vmatpush1.msra.mxu0 0.0
    %1182 = vmatprep.subr.mxu0 0.0
    %1183 = vmatpush1.msra.mxu0 0.0
    %1184 = vmatprep.subr.mxu0 0.0
    %1185 = vmatpush1.msra.mxu0 0.0
    %1186 = vmatprep.subr.mxu0 0.0
    %1187 = vmatpush1.msra.mxu0 0.0
    %1188 = vmatprep.subr.mxu0 0.0
    %1189 = vmatpush1.msra.mxu0 0.0
    %1190 = vmatprep.subr.mxu0 0.0
    %1191 = vmatpush1.msra.mxu0 0.0
    %1192 = vmatprep.subr.mxu0 0.0
    %1193 = vmatpush1.msra.mxu0 0.0
    %1194 = vmatprep.subr.mxu0 0.0
    %1195 = vmatpush1.msra.mxu0 0.0
    %1196 = vmatprep.mubr.f32.mxu0 0.0
    %1197 = vmatmul.mubr.f32.gmra.mrb[0].mxu0 %v1130
    %v1198 = vpop.f32.mrb[0].mxu0
    %v1199 = vadd.f32 %v1127, %v1198
    %v1200 = vpop.f32.mrb[0].mxu0
    %1201 = vdwg.mxu0
    %v1202 = vmul.f32 %v1199, %v1199
    %vm1203 = vcmask 254976
    %v1204 = vsel %vm1203, %v1202, 0.0
    %1205 = vadd.xlane.f32.xlu0 %v1204
    %v1206 = vpop.xlane.xlu0 %1205
    %v1207 = vmax.f32 %v1206, 1e-24
    %v1208 = vrsqrt.pop %v1207
    %v1209 = vmul.f32 %v1207, %v1208
    %vm1210 = vcmp.eq.f32.partialorder %v1207, inf
    %v1211 = vsel %vm1210, %v1207, %v1209
    %vm1212 = vcmp.eq.f32.partialorder %v1207, 0.0
    %v1213 = vand.u32 %v1207, 2147483648
    %v1214 = vsel %vm1212, %v1213, %v1211
    %v1215 = vrcp.pop %v1214
    %v1216 = vmul.f32 %v1199, %v1215
    %v1217 = vld [vmem:[%s2] sm:$0x3]
    %v1218 = vld [vmem:[%s5 + $0x30] sm:$0xff]
    %v1219 = vld [vmem:[%s5 + $0x38] sm:$0xf]
    %v1220 = vld [vmem:[%s5 + $0x3d] sm:$0x1]
    %v1221 = vlaneseq
    %v1222 = vshrl.u32 %v1221, 7
    %v1223 = vsub.s32 0, %v1222
    %v1224 = vrot.slane %v1220, %v1223
    %vm1225 = vcmask 97280
    %v1227 = vsel %vm1225, %v1217, 0
    %vm1229 = vcmask 1043456
    %v1231 = vsel %vm1229, %v1219, 0
    %1233 = vmatprep.subr.mxu0 0.0
    %1234 = vmatpush1.msra.mxu0 %v1218
    %1235 = vmatprep.subr.mxu0 0.0
    %1236 = vmatpush1.msra.mxu0 %v1231
    %1237 = vmatprep.subr.mxu0 0.0
    %1238 = vmatpush1.msra.mxu0 0.0
    %1239 = vmatprep.subr.mxu0 0.0
    %1240 = vmatpush1.msra.mxu0 0.0
    %1241 = vmatprep.subr.mxu0 0.0
    %1242 = vmatpush1.msra.mxu0 0.0
    %1243 = vmatprep.subr.mxu0 0.0
    %1244 = vmatpush1.msra.mxu0 0.0
    %1245 = vmatprep.subr.mxu0 0.0
    %1246 = vmatpush1.msra.mxu0 0.0
    %1247 = vmatprep.subr.mxu0 0.0
    %1248 = vmatpush1.msra.mxu0 0.0
    %1249 = vmatprep.subr.mxu0 0.0
    %1250 = vmatpush1.msra.mxu0 0.0
    %1251 = vmatprep.subr.mxu0 0.0
    %1252 = vmatpush1.msra.mxu0 0.0
    %1253 = vmatprep.subr.mxu0 0.0
    %1254 = vmatpush1.msra.mxu0 0.0
    %1255 = vmatprep.subr.mxu0 0.0
    %1256 = vmatpush1.msra.mxu0 0.0
    %1257 = vmatprep.subr.mxu0 0.0
    %1258 = vmatpush1.msra.mxu0 0.0
    %1259 = vmatprep.subr.mxu0 0.0
    %1260 = vmatpush1.msra.mxu0 0.0
    %1261 = vmatprep.subr.mxu0 0.0
    %1262 = vmatpush1.msra.mxu0 0.0
    %1263 = vmatprep.subr.mxu0 0.0
    %1264 = vmatpush1.msra.mxu0 0.0
    %1265 = vmatprep.subr.mxu0 0.0
    %1266 = vmatpush1.msra.mxu0 0.0
    %1267 = vmatprep.subr.mxu0 0.0
    %1268 = vmatpush1.msra.mxu0 0.0
    %1269 = vmatprep.subr.mxu0 0.0
    %1270 = vmatpush1.msra.mxu0 0.0
    %1271 = vmatprep.subr.mxu0 0.0
    %1272 = vmatpush1.msra.mxu0 0.0
    %1273 = vmatprep.subr.mxu0 0.0
    %1274 = vmatpush1.msra.mxu0 0.0
    %1275 = vmatprep.subr.mxu0 0.0
    %1276 = vmatpush1.msra.mxu0 0.0
    %1277 = vmatprep.subr.mxu0 0.0
    %1278 = vmatpush1.msra.mxu0 0.0
    %1279 = vmatprep.subr.mxu0 0.0
    %1280 = vmatpush1.msra.mxu0 0.0
    %1281 = vmatprep.subr.mxu0 0.0
    %1282 = vmatpush1.msra.mxu0 0.0
    %1283 = vmatprep.subr.mxu0 0.0
    %1284 = vmatpush1.msra.mxu0 0.0
    %1285 = vmatprep.subr.mxu0 0.0
    %1286 = vmatpush1.msra.mxu0 0.0
    %1287 = vmatprep.subr.mxu0 0.0
    %1288 = vmatpush1.msra.mxu0 0.0
    %1289 = vmatprep.subr.mxu0 0.0
    %1290 = vmatpush1.msra.mxu0 0.0
    %1291 = vmatprep.subr.mxu0 0.0
    %1292 = vmatpush1.msra.mxu0 0.0
    %1293 = vmatprep.subr.mxu0 0.0
    %1294 = vmatpush1.msra.mxu0 0.0
    %1295 = vmatprep.subr.mxu0 0.0
    %1296 = vmatpush1.msra.mxu0 0.0
    %1297 = vmatprep.mubr.f32.mxu0 0.0
    %1298 = vmatmul.mubr.f32.gmra.mrb[0].mxu0 %v1227
    %v1299 = vpop.f32.mrb[0].mxu0
    %v1300 = vadd.f32 %v1224, %v1299
    %v1301 = vpop.f32.mrb[0].mxu0
    %1302 = vdwg.mxu0
    %v1303 = vld [vmem:[%s5] sm:$0xff]
    %v1304 = vld [vmem:[%s5 + $0x8] sm:$0xff]
    %v1305 = vld [vmem:[%s5 + $0x10] sm:$0xff]
    %v1306 = vld [vmem:[%s5 + $0x18] sm:$0xff]
    %v1307 = vld [vmem:[%s5 + $0x20] sm:$0xff]
    %v1308 = vld [vmem:[%s5 + $0x28] sm:$0xff]
    %v1309 = vld [vmem:[%s5 + $0x30] sm:$0xff]
    %v1310 = vld [vmem:[%s5 + $0x38] sm:$0xff]
    %1315 = vrot.lane.b32.xlu0 %v1307, 96
    %v1316 = vpop.permute.xlu0 %1315
    %1317 = vrot.lane.b32.xlu0 %v1308, 96
    %v1318 = vpop.permute.xlu0 %1317
    %1319 = vrot.lane.b32.xlu0 %v1309, 96
    %v1320 = vpop.permute.xlu0 %1319
    %1321 = vrot.lane.b32.xlu0 %v1310, 96
    %v1322 = vpop.permute.xlu0 %1321
    %v1328 = vsel %vm137, %v1216, 0
    %1330 = vmatprep.subr.mxu0 0.0
    %1331 = vmatpush1.msra.mxu0 %v1316
    %1332 = vmatprep.subr.mxu0 0.0
    %1333 = vmatpush1.msra.mxu0 %v1318
    %1334 = vmatprep.subr.mxu0 0.0
    %1335 = vmatpush1.msra.mxu0 %v1320
    %1336 = vmatprep.subr.mxu0 0.0
    %1337 = vmatpush1.msra.mxu0 %v1322
    %1338 = vmatprep.subr.mxu0 0.0
    %1339 = vmatpush1.msra.mxu0 0.0
    %1340 = vmatprep.subr.mxu0 0.0
    %1341 = vmatpush1.msra.mxu0 0.0
    %1342 = vmatprep.subr.mxu0 0.0
    %1343 = vmatpush1.msra.mxu0 0.0
    %1344 = vmatprep.subr.mxu0 0.0
    %1345 = vmatpush1.msra.mxu0 0.0
    %1346 = vmatprep.subr.mxu0 0.0
    %1347 = vmatpush1.msra.mxu0 0.0
    %1348 = vmatprep.subr.mxu0 0.0
    %1349 = vmatpush1.msra.mxu0 0.0
    %1350 = vmatprep.subr.mxu0 0.0
    %1351 = vmatpush1.msra.mxu0 0.0
    %1352 = vmatprep.subr.mxu0 0.0
    %1353 = vmatpush1.msra.mxu0 0.0
    %1354 = vmatprep.subr.mxu0 0.0
    %1355 = vmatpush1.msra.mxu0 0.0
    %1356 = vmatprep.subr.mxu0 0.0
    %1357 = vmatpush1.msra.mxu0 0.0
    %1358 = vmatprep.subr.mxu0 0.0
    %1359 = vmatpush1.msra.mxu0 0.0
    %1360 = vmatprep.subr.mxu0 0.0
    %1361 = vmatpush1.msra.mxu0 0.0
    %1362 = vmatprep.subr.mxu0 0.0
    %1363 = vmatpush1.msra.mxu0 0.0
    %1364 = vmatprep.subr.mxu0 0.0
    %1365 = vmatpush1.msra.mxu0 0.0
    %1366 = vmatprep.subr.mxu0 0.0
    %1367 = vmatpush1.msra.mxu0 0.0
    %1368 = vmatprep.subr.mxu0 0.0
    %1369 = vmatpush1.msra.mxu0 0.0
    %1370 = vmatprep.subr.mxu0 0.0
    %1371 = vmatpush1.msra.mxu0 0.0
    %1372 = vmatprep.subr.mxu0 0.0
    %1373 = vmatpush1.msra.mxu0 0.0
    %1374 = vmatprep.subr.mxu0 0.0
    %1375 = vmatpush1.msra.mxu0 0.0
    %1376 = vmatprep.subr.mxu0 0.0
    %1377 = vmatpush1.msra.mxu0 0.0
    %1378 = vmatprep.subr.mxu0 0.0
    %1379 = vmatpush1.msra.mxu0 0.0
    %1380 = vmatprep.subr.mxu0 0.0
    %1381 = vmatpush1.msra.mxu0 0.0
    %1382 = vmatprep.subr.mxu0 0.0
    %1383 = vmatpush1.msra.mxu0 0.0
    %1384 = vmatprep.subr.mxu0 0.0
    %1385 = vmatpush1.msra.mxu0 0.0
    %1386 = vmatprep.subr.mxu0 0.0
    %1387 = vmatpush1.msra.mxu0 0.0
    %1388 = vmatprep.subr.mxu0 0.0
    %1389 = vmatpush1.msra.mxu0 0.0
    %1390 = vmatprep.subr.mxu0 0.0
    %1391 = vmatpush1.msra.mxu0 0.0
    %1392 = vmatprep.subr.mxu0 0.0
    %1393 = vmatpush1.msra.mxu0 0.0
    %1394 = vmatprep.mubr.f32.mxu0 0.0
    %1395 = vmatmul.mubr.f32.gmra.mrb[0].mxu0 %v1328
    %v1396 = vpop.f32.mrb[0].mxu0
    %v1397 = vadd.f32 0.0, %v1396
    %v1398 = vpop.f32.mrb[0].mxu0
    %1399 = vdwg.mxu0
    %1401 = vrot.lane.b32.xlu0 %v1049, 64
    %v1402 = vpop.permute.xlu0 %1401
    %1407 = vrot.lane.b32.xlu0 %v1303, 96
    %v1408 = vpop.permute.xlu0 %1407
    %1409 = vrot.lane.b32.xlu0 %v1304, 96
    %v1410 = vpop.permute.xlu0 %1409
    %1411 = vrot.lane.b32.xlu0 %v1305, 96
    %v1412 = vpop.permute.xlu0 %1411
    %1413 = vrot.lane.b32.xlu0 %v1306, 96
    %v1414 = vpop.permute.xlu0 %1413
    %v1419 = vsel %vm137, %v1402, 0
    %1421 = vmatprep.subr.mxu0 0.0
    %1422 = vmatpush1.msra.mxu0 %v1408
    %1423 = vmatprep.subr.mxu0 0.0
    %1424 = vmatpush1.msra.mxu0 %v1410
    %1425 = vmatprep.subr.mxu0 0.0
    %1426 = vmatpush1.msra.mxu0 %v1412
    %1427 = vmatprep.subr.mxu0 0.0
    %1428 = vmatpush1.msra.mxu0 %v1414
    %1429 = vmatprep.subr.mxu0 0.0
    %1430 = vmatpush1.msra.mxu0 0.0
    %1431 = vmatprep.subr.mxu0 0.0
    %1432 = vmatpush1.msra.mxu0 0.0
    %1433 = vmatprep.subr.mxu0 0.0
    %1434 = vmatpush1.msra.mxu0 0.0
    %1435 = vmatprep.subr.mxu0 0.0
    %1436 = vmatpush1.msra.mxu0 0.0
    %1437 = vmatprep.subr.mxu0 0.0
    %1438 = vmatpush1.msra.mxu0 0.0
    %1439 = vmatprep.subr.mxu0 0.0
    %1440 = vmatpush1.msra.mxu0 0.0
    %1441 = vmatprep.subr.mxu0 0.0
    %1442 = vmatpush1.msra.mxu0 0.0
    %1443 = vmatprep.subr.mxu0 0.0
    %1444 = vmatpush1.msra.mxu0 0.0
    %1445 = vmatprep.subr.mxu0 0.0
    %1446 = vmatpush1.msra.mxu0 0.0
    %1447 = vmatprep.subr.mxu0 0.0
    %1448 = vmatpush1.msra.mxu0 0.0
    %1449 = vmatprep.subr.mxu0 0.0
    %1450 = vmatpush1.msra.mxu0 0.0
    %1451 = vmatprep.subr.mxu0 0.0
    %1452 = vmatpush1.msra.mxu0 0.0
    %1453 = vmatprep.subr.mxu0 0.0
    %1454 = vmatpush1.msra.mxu0 0.0
    %1455 = vmatprep.subr.mxu0 0.0
    %1456 = vmatpush1.msra.mxu0 0.0
    %1457 = vmatprep.subr.mxu0 0.0
    %1458 = vmatpush1.msra.mxu0 0.0
    %1459 = vmatprep.subr.mxu0 0.0
    %1460 = vmatpush1.msra.mxu0 0.0
    %1461 = vmatprep.subr.mxu0 0.0
    %1462 = vmatpush1.msra.mxu0 0.0
    %1463 = vmatprep.subr.mxu0 0.0
    %1464 = vmatpush1.msra.mxu0 0.0
    %1465 = vmatprep.subr.mxu0 0.0
    %1466 = vmatpush1.msra.mxu0 0.0
    %1467 = vmatprep.subr.mxu0 0.0
    %1468 = vmatpush1.msra.mxu0 0.0
    %1469 = vmatprep.subr.mxu0 0.0
    %1470 = vmatpush1.msra.mxu0 0.0
    %1471 = vmatprep.subr.mxu0 0.0
    %1472 = vmatpush1.msra.mxu0 0.0
    %1473 = vmatprep.subr.mxu0 0.0
    %1474 = vmatpush1.msra.mxu0 0.0
    %1475 = vmatprep.subr.mxu0 0.0
    %1476 = vmatpush1.msra.mxu0 0.0
    %1477 = vmatprep.subr.mxu0 0.0
    %1478 = vmatpush1.msra.mxu0 0.0
    %1479 = vmatprep.subr.mxu0 0.0
    %1480 = vmatpush1.msra.mxu0 0.0
    %1481 = vmatprep.subr.mxu0 0.0
    %1482 = vmatpush1.msra.mxu0 0.0
    %1483 = vmatprep.subr.mxu0 0.0
    %1484 = vmatpush1.msra.mxu0 0.0
    %1485 = vmatprep.mubr.f32.mxu0 0.0
    %1486 = vmatmul.mubr.f32.gmra.mrb[0].mxu0 %v1419
    %v1487 = vpop.f32.mrb[0].mxu0
    %v1488 = vadd.f32 %v1397, %v1487
    %v1489 = vpop.f32.mrb[0].mxu0
    %1490 = vdwg.mxu0
    %v1491 = vld [vmem:[%s5 + $0x40] sm:$0xff]
    %v1492 = vld [vmem:[%s5 + $0x48] sm:$0xff]
    %v1493 = vld [vmem:[%s5 + $0x50] sm:$0xff]
    %v1494 = vld [vmem:[%s5 + $0x58] sm:$0xff]
    %1499 = vrot.lane.b32.xlu0 %v1491, 96
    %v1500 = vpop.permute.xlu0 %1499
    %1501 = vrot.lane.b32.xlu0 %v1492, 96
    %v1502 = vpop.permute.xlu0 %1501
    %1503 = vrot.lane.b32.xlu0 %v1493, 96
    %v1504 = vpop.permute.xlu0 %1503
    %1505 = vrot.lane.b32.xlu0 %v1494, 96
    %v1506 = vpop.permute.xlu0 %1505
    %v1512 = vsel %vm137, %v1300, 0
    %1514 = vmatprep.subr.mxu0 0.0
    %1515 = vmatpush1.msra.mxu0 %v1500
    %1516 = vmatprep.subr.mxu0 0.0
    %1517 = vmatpush1.msra.mxu0 %v1502
    %1518 = vmatprep.subr.mxu0 0.0
    %1519 = vmatpush1.msra.mxu0 %v1504
    %1520 = vmatprep.subr.mxu0 0.0
    %1521 = vmatpush1.msra.mxu0 %v1506
    %1522 = vmatprep.subr.mxu0 0.0
    %1523 = vmatpush1.msra.mxu0 0.0
    %1524 = vmatprep.subr.mxu0 0.0
    %1525 = vmatpush1.msra.mxu0 0.0
    %1526 = vmatprep.subr.mxu0 0.0
    %1527 = vmatpush1.msra.mxu0 0.0
    %1528 = vmatprep.subr.mxu0 0.0
    %1529 = vmatpush1.msra.mxu0 0.0
    %1530 = vmatprep.subr.mxu0 0.0
    %1531 = vmatpush1.msra.mxu0 0.0
    %1532 = vmatprep.subr.mxu0 0.0
    %1533 = vmatpush1.msra.mxu0 0.0
    %1534 = vmatprep.subr.mxu0 0.0
    %1535 = vmatpush1.msra.mxu0 0.0
    %1536 = vmatprep.subr.mxu0 0.0
    %1537 = vmatpush1.msra.mxu0 0.0
    %1538 = vmatprep.subr.mxu0 0.0
    %1539 = vmatpush1.msra.mxu0 0.0
    %1540 = vmatprep.subr.mxu0 0.0
    %1541 = vmatpush1.msra.mxu0 0.0
    %1542 = vmatprep.subr.mxu0 0.0
    %1543 = vmatpush1.msra.mxu0 0.0
    %1544 = vmatprep.subr.mxu0 0.0
    %1545 = vmatpush1.msra.mxu0 0.0
    %1546 = vmatprep.subr.mxu0 0.0
    %1547 = vmatpush1.msra.mxu0 0.0
    %1548 = vmatprep.subr.mxu0 0.0
    %1549 = vmatpush1.msra.mxu0 0.0
    %1550 = vmatprep.subr.mxu0 0.0
    %1551 = vmatpush1.msra.mxu0 0.0
    %1552 = vmatprep.subr.mxu0 0.0
    %1553 = vmatpush1.msra.mxu0 0.0
    %1554 = vmatprep.subr.mxu0 0.0
    %1555 = vmatpush1.msra.mxu0 0.0
    %1556 = vmatprep.subr.mxu0 0.0
    %1557 = vmatpush1.msra.mxu0 0.0
    %1558 = vmatprep.subr.mxu0 0.0
    %1559 = vmatpush1.msra.mxu0 0.0
    %1560 = vmatprep.subr.mxu0 0.0
    %1561 = vmatpush1.msra.mxu0 0.0
    %1562 = vmatprep.subr.mxu0 0.0
    %1563 = vmatpush1.msra.mxu0 0.0
    %1564 = vmatprep.subr.mxu0 0.0
    %1565 = vmatpush1.msra.mxu0 0.0
    %1566 = vmatprep.subr.mxu0 0.0
    %1567 = vmatpush1.msra.mxu0 0.0
    %1568 = vmatprep.subr.mxu0 0.0
    %1569 = vmatpush1.msra.mxu0 0.0
    %1570 = vmatprep.subr.mxu0 0.0
    %1571 = vmatpush1.msra.mxu0 0.0
    %1572 = vmatprep.subr.mxu0 0.0
    %1573 = vmatpush1.msra.mxu0 0.0
    %1574 = vmatprep.subr.mxu0 0.0
    %1575 = vmatpush1.msra.mxu0 0.0
    %1576 = vmatprep.subr.mxu0 0.0
    %1577 = vmatpush1.msra.mxu0 0.0
    %1578 = vmatprep.mubr.f32.mxu0 0.0
    %1579 = vmatmul.mubr.f32.gmra.mrb[0].mxu0 %v1512
    %v1580 = vpop.f32.mrb[0].mxu0
    %v1581 = vadd.f32 0.0, %v1580
    %v1582 = vpop.f32.mrb[0].mxu0
    %1583 = vdwg.mxu0
    %v1584 = vadd.f32 %v1488, %v1581
    %v1585 = vld [vmem:[%s5 + $0x60] sm:$0x1]
    %v1586 = vlaneseq
    %v1587 = vshrl.u32 %v1586, 7
    %v1588 = vsub.s32 0, %v1587
    %v1589 = vrot.slane %v1585, %v1588
    %1591 = vrot.lane.b32.xlu0 %v1589, 96
    %v1592 = vpop.permute.xlu0 %1591
    %v1594 = vadd.f32 %v1584, %v1592
    %v1595 = vmax.f32 %v1594, 0.0
    %v1596 = vld [vmem:[%s5] sm:$0xff]
    %v1597 = vld [vmem:[%s5 + $0x8] sm:$0xff]
    %v1598 = vld [vmem:[%s5 + $0x10] sm:$0xff]
    %v1599 = vld [vmem:[%s5 + $0x18] sm:$0x1]
    %v1600 = vlaneseq
    %v1601 = vshrl.u32 %v1600, 7
    %v1602 = vsub.s32 0, %v1601
    %v1603 = vrot.slane %v1599, %v1602
    %1607 = vrot.lane.b32.xlu0 %v1596, 72
    %v1608 = vpop.permute.xlu0 %1607
    %1609 = vrot.lane.b32.xlu0 %v1597, 72
    %v1610 = vpop.permute.xlu0 %1609
    %1611 = vrot.lane.b32.xlu0 %v1598, 72
    %v1612 = vpop.permute.xlu0 %1611
    %1617 = vrot.lane.b32.xlu0 %v1603, 72
    %v1618 = vpop.permute.xlu0 %1617
    %vm1620 = vcmask 195584
    %v1622 = vsel %vm1620, %v1595, 0
    %1624 = vmatprep.subr.mxu0 0.0
    %1625 = vmatpush1.msra.mxu0 %v1608
    %1626 = vmatprep.subr.mxu0 0.0
    %1627 = vmatpush1.msra.mxu0 %v1610
    %1628 = vmatprep.subr.mxu0 0.0
    %1629 = vmatpush1.msra.mxu0 %v1612
    %1630 = vmatprep.subr.mxu0 0.0
    %1631 = vmatpush1.msra.mxu0 0.0
    %1632 = vmatprep.subr.mxu0 0.0
    %1633 = vmatpush1.msra.mxu0 0.0
    %1634 = vmatprep.subr.mxu0 0.0
    %1635 = vmatpush1.msra.mxu0 0.0
    %1636 = vmatprep.subr.mxu0 0.0
    %1637 = vmatpush1.msra.mxu0 0.0
    %1638 = vmatprep.subr.mxu0 0.0
    %1639 = vmatpush1.msra.mxu0 0.0
    %1640 = vmatprep.subr.mxu0 0.0
    %1641 = vmatpush1.msra.mxu0 0.0
    %1642 = vmatprep.subr.mxu0 0.0
    %1643 = vmatpush1.msra.mxu0 0.0
    %1644 = vmatprep.subr.mxu0 0.0
    %1645 = vmatpush1.msra.mxu0 0.0
    %1646 = vmatprep.subr.mxu0 0.0
    %1647 = vmatpush1.msra.mxu0 0.0
    %1648 = vmatprep.subr.mxu0 0.0
    %1649 = vmatpush1.msra.mxu0 0.0
    %1650 = vmatprep.subr.mxu0 0.0
    %1651 = vmatpush1.msra.mxu0 0.0
    %1652 = vmatprep.subr.mxu0 0.0
    %1653 = vmatpush1.msra.mxu0 0.0
    %1654 = vmatprep.subr.mxu0 0.0
    %1655 = vmatpush1.msra.mxu0 0.0
    %1656 = vmatprep.subr.mxu0 0.0
    %1657 = vmatpush1.msra.mxu0 0.0
    %1658 = vmatprep.subr.mxu0 0.0
    %1659 = vmatpush1.msra.mxu0 0.0
    %1660 = vmatprep.subr.mxu0 0.0
    %1661 = vmatpush1.msra.mxu0 0.0
    %1662 = vmatprep.subr.mxu0 0.0
    %1663 = vmatpush1.msra.mxu0 0.0
    %1664 = vmatprep.subr.mxu0 0.0
    %1665 = vmatpush1.msra.mxu0 0.0
    %1666 = vmatprep.subr.mxu0 0.0
    %1667 = vmatpush1.msra.mxu0 0.0
    %1668 = vmatprep.subr.mxu0 0.0
    %1669 = vmatpush1.msra.mxu0 0.0
    %1670 = vmatprep.subr.mxu0 0.0
    %1671 = vmatpush1.msra.mxu0 0.0
    %1672 = vmatprep.subr.mxu0 0.0
    %1673 = vmatpush1.msra.mxu0 0.0
    %1674 = vmatprep.subr.mxu0 0.0
    %1675 = vmatpush1.msra.mxu0 0.0
    %1676 = vmatprep.subr.mxu0 0.0
    %1677 = vmatpush1.msra.mxu0 0.0
    %1678 = vmatprep.subr.mxu0 0.0
    %1679 = vmatpush1.msra.mxu0 0.0
    %1680 = vmatprep.subr.mxu0 0.0
    %1681 = vmatpush1.msra.mxu0 0.0
    %1682 = vmatprep.subr.mxu0 0.0
    %1683 = vmatpush1.msra.mxu0 0.0
    %1684 = vmatprep.subr.mxu0 0.0
    %1685 = vmatpush1.msra.mxu0 0.0
    %1686 = vmatprep.subr.mxu0 0.0
    %1687 = vmatpush1.msra.mxu0 0.0
    %1688 = vmatprep.mubr.f32.mxu0 0.0
    %1689 = vmatmul.mubr.f32.gmra.mrb[0].mxu0 %v1622
    %v1690 = vpop.f32.mrb[0].mxu0
    %v1691 = vadd.f32 %v1618, %v1690
    %v1692 = vpop.f32.mrb[0].mxu0
    %1693 = vdwg.mxu0
    %vm1694 = vcmask 41984
    %1695 = vst.msk [vmem:[#allocation6] sm:$0x3] %vm1694, %v1691
    // Predicated region
    $region30: #{multi_label_model_forward.1} parent=1 // pred_check
      _
    $region31: #{multi_label_model_forward.1} parent=1 // pred_check_branch
      %1697 = sbr.rel (0) target = $region33
    $region32: #{multi_label_model_forward.1} parent=1 // pred_region
      %s1699 = ssub.s32 32, 32
      %1700 = vsyncadd [#allocation4], %s1699
      %s1702 = sshll.u32 [#allocation6], 4
      %s1703 = int_to_ptr.vmem [resolvable:$true] %s1702
      %1705 = dma.vmem_to_hbm [thread:$0]  %s1703, 32, %s6, [#allocation4]
    $region33: #{multi_label_model_forward.1} parent=1 // pred_fallthru
      _
    // Predicated region
    $region34: #{multi_label_model_forward.1} parent=1 // pred_check
      _
    $region35: #{multi_label_model_forward.1} parent=1 // pred_check_branch
      %1707 = sbr.rel (0) target = $region37
    $region36: #{multi_label_model_forward.1} parent=1 // pred_region
      %1708 = dma.done [#allocation4], 32
    $region37: #{multi_label_model_forward.1} parent=1 // pred_fallthru
      _
    %1709 = vsyncpa [#allocation4], 1
    %1710 = vsyncpa [#allocation5], 1

</llo_original>
